<compile_context>
chip_gen: v6e
topology: v6e:2x2x1
jax: 0.10.0
libtpu: 0.0.40
codegen_flags: <defaults>
</compile_context>

<pallas_src>
import jax
import jax.numpy as jnp
from jax import lax
from jax.experimental import pallas as pl
from jax.experimental.pallas import tpu as pltpu


# -----------------------------------------------------------------------------
# Kernel
# -----------------------------------------------------------------------------
def _make_kernel(nd, d_tile, chunk):
    n_chunks = d_tile // chunk
    n_lane_blocks = chunk // 128

    def kernel(img_ref, quef_ref, wstk_ref, wque_ref, wout_ref,
               out_ref, lpart_ref, acc_ref):
        # img_ref : [B, d_tile]   f32 image columns for the current D tile
        # quef_ref: [B, E]        f32 mean-pooled question features (resident)
        # wstk_ref: [d_tile, H]   bf16 stacked weight tile:
        #                           phase 0 -> encoder rows   W_img[d*dt:(d+1)*dt, :]
        #                           phase 1 -> decoder columns W_dec[:, d*dt:(d+1)*dt].T
        # wque_ref: [E, H]        bf16 question-encoder weight (resident)
        # wout_ref: [H, A_pad]    bf16 answer head, lane-padded to 128 (resident)
        # out_ref : [B, A_pad]    f32 answer logits (resident output, written once)
        # lpart_ref:[B, 128]      f32 per-lane partial sums of (recon - img)^2
        # acc_ref : [B, H]        f32 VMEM scratch: h_img accumulator, then `fused`
        p = pl.program_id(0)          # phase: 0 = encode, 1 = decode + MSE
        d = pl.program_id(1)          # D tile index

        # NOTE: relies on pl.when blocks executing in program order within one
        # grid step (init -> encode -> fuse when nd == 1) and on the outputs /
        # scratch staying resident because their block indices are constant.
        @pl.when(jnp.logical_and(p == 0, d == 0))
        def _init():
            acc_ref[...] = jnp.zeros_like(acc_ref)
            lpart_ref[...] = jnp.zeros_like(lpart_ref)

        @pl.when(p == 0)
        def _encode():                 # h_img partial: img tile @ W_img tile
            acc_ref[...] += jnp.dot(
                img_ref[...].astype(jnp.bfloat16), wstk_ref[...],
                preferred_element_type=jnp.float32)

        @pl.when(jnp.logical_and(p == 0, d == nd - 1))
        def _fuse_and_answer():
            h_img = jnp.maximum(acc_ref[...], 0.0)
            h_que = jnp.maximum(
                jnp.dot(quef_ref[...].astype(jnp.bfloat16), wque_ref[...],
                        preferred_element_type=jnp.float32), 0.0)
            fused = h_img * h_que
            acc_ref[...] = fused       # scratch now carries `fused` into phase 1
            out_ref[...] = jnp.dot(fused.astype(jnp.bfloat16), wout_ref[...],
                                   preferred_element_type=jnp.float32)

        @pl.when(p == 1)
        def _decode_and_mse():
            fused_bf = acc_ref[...].astype(jnp.bfloat16)
            for c in range(n_chunks):                          # 512-lane chunks keep
                w_c = wstk_ref[c * chunk:(c + 1) * chunk, :]   # recon/diff in vregs
                recon_c = lax.dot_general(                     # fused @ W_dec tile
                    fused_bf, w_c,
                    dimension_numbers=(((1,), (1,)), ((), ())),
                    preferred_element_type=jnp.float32)        # [B, chunk]
                diff = recon_c - img_ref[:, c * chunk:(c + 1) * chunk]
                d2 = diff * diff
                for s in range(n_lane_blocks):                 # pure-VPU per-lane accum
                    lpart_ref[...] += d2[:, s * 128:(s + 1) * 128]

    return kernel


# -----------------------------------------------------------------------------
# One-time parameter preprocessing (hoisted out of the per-call forward)
# -----------------------------------------------------------------------------
def pack_params(w_img, w_que, w_out, w_dec, *, d_tile=None, batch_hint=8,
                vmem_budget_bytes=12 << 20):
    """Cast / pad / stack the weights once so the hot path never re-reads them in f32."""
    D_img, H = w_img.shape
    E = w_que.shape[0]
    A = w_out.shape[1]
    assert w_que.shape[1] == H and w_out.shape[0] == H and w_dec.shape == (H, D_img)

    A_pad = max(128, ((A + 127) // 128) * 128)        # lane-dense logits store

    # --- choose d_tile from the VMEM budget (default budget is safe on v5e's
    #     16 MiB scoped default; v6e 32 MiB / v7x 64 MiB physical have headroom).
    if d_tile is None:
        resident = (E * H + H * A_pad) * 2 + batch_hint * (A_pad + E + H + 128) * 4
        per_col = 2 * H * 2 + 2 * batch_hint * 4      # stacked-weight dbuf + f32 img dbuf
        d_tile = max(128, (vmem_budget_bytes - resident) // per_col)
    d_tile = int(min(d_tile, 8192, ((D_img + 127) // 128) * 128))
    d_tile = max(128, (d_tile // 128) * 128)
    if d_tile >= 512:
        d_tile = (d_tile // 512) * 512                # keep phase-1 chunking even
    chunk = min(512, d_tile)

    D_pad = ((D_img + d_tile - 1) // d_tile) * d_tile
    nd = D_pad // d_tile
    pad_d = D_pad - D_img

    w_img_p = jnp.pad(w_img, ((0, pad_d), (0, 0))) if pad_d else w_img
    w_decT = w_dec.T
    w_decT_p = jnp.pad(w_decT, ((0, pad_d), (0, 0))) if pad_d else w_decT
    # Stacked stream: rows [0, D_pad) = encoder rows, rows [D_pad, 2*D_pad) =
    # transposed decoder columns.  One streamed BlockSpec serves both phases.
    w_stream = jnp.concatenate([w_img_p, w_decT_p], axis=0).astype(jnp.bfloat16)
    w_que_bf = w_que.astype(jnp.bfloat16)
    w_out_bf = jnp.pad(w_out, ((0, 0), (0, A_pad - A))).astype(jnp.bfloat16)

    meta = dict(D_img=D_img, D_pad=D_pad, d_tile=d_tile, chunk=chunk, nd=nd,
                H=H, E=E, A=A, A_pad=A_pad)
    return dict(w_stream=w_stream, w_que=w_que_bf, w_out=w_out_bf, meta=meta)


# -----------------------------------------------------------------------------
# Forward pass:  out, recon_loss = Classifier(img, que)
# -----------------------------------------------------------------------------
def classifier_forward(img_nchw, que, params, *, vmem_limit_bytes=None):
    meta = params["meta"]
    D_img, D_pad, d_tile, chunk, nd = (meta[k] for k in
                                       ("D_img", "D_pad", "d_tile", "chunk", "nd"))
    H, E, A, A_pad = meta["H"], meta["E"], meta["A"], meta["A_pad"]

    B = img_nchw.shape[0]
    img_flat = img_nchw.reshape(B, -1).astype(jnp.float32)   # row-major == torch .view
    assert img_flat.shape[1] == D_img
    if D_pad != D_img:
        img_flat = jnp.pad(img_flat, ((0, 0), (0, D_pad - D_img)))

    # Question mean-pool in the wrapper: only a [B, E] tile enters the kernel.
    que_feat = jnp.mean(que.astype(jnp.float32), axis=1)     # [B, E]

    kernel = _make_kernel(nd, d_tile, chunk)

    if vmem_limit_bytes is not None:
        vmem_limit_bytes = int(min(vmem_limit_bytes, 48 << 20))   # v7x: 64 MiB physical

    out_pad, lpart = pl.pallas_call(
        kernel,
        out_shape=(
            jax.ShapeDtypeStruct((B, A_pad), jnp.float32),    # answer logits
            jax.ShapeDtypeStruct((B, 128), jnp.float32),      # per-lane sum-sq partials
        ),
        grid=(2, nd),                                         # (phase, D tile)
        in_specs=[
            pl.BlockSpec((B, d_tile), lambda p, d: (0, d)),          # f32 image cols
            pl.BlockSpec((B, E), lambda p, d: (0, 0)),               # pooled question
            pl.BlockSpec((d_tile, H), lambda p, d: (p * nd + d, 0)), # stacked weights
            pl.BlockSpec((E, H), lambda p, d: (0, 0)),               # w_que resident
            pl.BlockSpec((H, A_pad), lambda p, d: (0, 0)),           # w_out resident
        ],
        out_specs=(
            pl.BlockSpec((B, A_pad), lambda p, d: (0, 0)),
            pl.BlockSpec((B, 128), lambda p, d: (0, 0)),
        ),
        scratch_shapes=[
            pltpu.VMEM((B, H), jnp.float32),     # h_img accumulator, then `fused`
        ],
        compiler_params=pltpu.CompilerParams(
            dimension_semantics=("arbitrary", "arbitrary"),
            vmem_limit_bytes=vmem_limit_bytes),
    )(img_flat, que_feat, params["w_stream"], params["w_que"], params["w_out"])

    recon_loss = jnp.sum(lpart) * (1.0 / float(B * D_img))   # tiny final reduce
    return out_pad[:, :A], recon_loss


if __name__ == "__main__":
    # small shapes consistent with the module's forward(img, que)
    B, C, Hs, Ws = 2, 8, 16, 16     # image: NCHW -> D_img = 2048
    S, E = 8, 32                    # question: [B, S, E] token embeddings
    HID = 128                       # hidden / fusion dim
    A = 10                          # number of answers

    key = jax.random.PRNGKey(0)
    k_img, k_que, k0, k1, k2, k3 = jax.random.split(key, 6)

    img = jax.random.normal(k_img, (B, C, Hs, Ws), dtype=jnp.float32)
    que = jax.random.normal(k_que, (B, S, E), dtype=jnp.float32)

    D_img = C * Hs * Ws
    w_img = 0.02 * jax.random.normal(k0, (D_img, HID), dtype=jnp.float32)
    w_que = 0.02 * jax.random.normal(k1, (E, HID), dtype=jnp.float32)
    w_out = 0.02 * jax.random.normal(k2, (HID, A), dtype=jnp.float32)
    w_dec = 0.02 * jax.random.normal(k3, (HID, D_img), dtype=jnp.float32)

    # One-time preprocessing (hoisted out of the per-call forward).  d_tile=1024
    # (instead of the VMEM-budgeted default, which would cover all of D_img at
    # these toy sizes) only to exercise multi-tile accumulation, the stacked
    # weight stream across both phases, and the phase-1 512-lane chunking.
    params = pack_params(w_img, w_que, w_out, w_dec, d_tile=1024, batch_hint=B)

    out, recon_loss = classifier_forward(img, que, params)
    jax.block_until_ready((out, recon_loss))

    # pure-JAX reference with matching bf16 MXU inputs / f32 accumulation
    bf = jnp.bfloat16
    img_f = img.reshape(B, -1)
    q_feat = jnp.mean(que, axis=1)
    h_i = jnp.maximum(jnp.dot(img_f.astype(bf), w_img.astype(bf),
                              preferred_element_type=jnp.float32), 0.0)
    h_q = jnp.maximum(jnp.dot(q_feat.astype(bf), w_que.astype(bf),
                              preferred_element_type=jnp.float32), 0.0)
    fused = h_i * h_q
    ref_out = jnp.dot(fused.astype(bf), w_out.astype(bf),
                      preferred_element_type=jnp.float32)
    recon = jnp.dot(fused.astype(bf), w_dec.astype(bf),
                    preferred_element_type=jnp.float32)
    ref_loss = jnp.mean((recon - img_f) ** 2)

    assert jnp.allclose(out, ref_out, atol=1e-3, rtol=1e-2), \
        float(jnp.max(jnp.abs(out - ref_out)))
    assert jnp.allclose(recon_loss, ref_loss, atol=1e-3, rtol=1e-2), \
        (float(recon_loss), float(ref_loss))

    print("KERNEL_OK")
</pallas_src>

<mosaic_0001>
module attributes {stable_mosaic.version = 11 : i64} {
  func.func @kernel(%arg0: i32, %arg1: i32, %arg2: memref<2x1024xf32, #tpu.memory_space<vmem>>, %arg3: memref<2x32xf32, #tpu.memory_space<vmem>>, %arg4: memref<1024x128xbf16, #tpu.memory_space<vmem>>, %arg5: memref<32x128xbf16, #tpu.memory_space<vmem>>, %arg6: memref<128x128xbf16, #tpu.memory_space<vmem>>, %arg7: memref<2x128xf32, #tpu.memory_space<vmem>>, %arg8: memref<2x128xf32, #tpu.memory_space<vmem>>, %arg9: memref<2x128xf32, #tpu.memory_space<vmem>>) attributes {dimension_semantics = [#tpu.dimension_semantics<arbitrary>, #tpu.dimension_semantics<arbitrary>], iteration_bounds = array<i64: 2, 2>, scalar_prefetch = 0 : i64, scratch_operands = 1 : i64, tpu.core_type = #tpu.core_type<tc>, window_params = [{transform_indices = @transform_0, window_bounds = array<i64: 2, 1024>}, {pipeline_mode = #tpu.pipeline_mode<synchronous>, transform_indices = @transform_1, window_bounds = array<i64: 2, 32>}, {transform_indices = @transform_2, window_bounds = array<i64: 1024, 128>}, {pipeline_mode = #tpu.pipeline_mode<synchronous>, transform_indices = @transform_3, window_bounds = array<i64: 32, 128>}, {pipeline_mode = #tpu.pipeline_mode<synchronous>, transform_indices = @transform_4, window_bounds = array<i64: 128, 128>}, {pipeline_mode = #tpu.pipeline_mode<synchronous>, transform_indices = @transform_5, window_bounds = array<i64: 2, 128>}, {pipeline_mode = #tpu.pipeline_mode<synchronous>, transform_indices = @transform_6, window_bounds = array<i64: 2, 128>}]} {
    %c0_i32 = arith.constant 0 : i32
    %0 = arith.cmpi eq, %arg0, %c0_i32 : i32
    %c0_i32_0 = arith.constant 0 : i32
    %1 = arith.cmpi eq, %arg1, %c0_i32_0 : i32
    %2 = arith.andi %0, %1 : i1
    %3 = arith.extui %2 : i1 to i32
    %c0_i32_1 = arith.constant 0 : i32
    %4 = arith.cmpi ne, %3, %c0_i32_1 : i32
    scf.if %4 {
      %cst = arith.constant 0.000000e+00 : f32
      %16 = vector.broadcast %cst : f32 to vector<2x128xf32>
      %c0 = arith.constant 0 : index
      %c0_8 = arith.constant 0 : index
      %17 = vector.load %arg9[%c0, %c0_8] : memref<2x128xf32, #tpu.memory_space<vmem>>, vector<2x128xf32>
      tpu.vector_store %arg9[%c0, %c0_8], %16 {strides = array<i32>} : memref<2x128xf32, #tpu.memory_space<vmem>>, vector<2x128xf32>,
      %cst_9 = arith.constant 0.000000e+00 : f32
      %18 = vector.broadcast %cst_9 : f32 to vector<2x128xf32>
      %c0_10 = arith.constant 0 : index
      %c0_11 = arith.constant 0 : index
      %19 = vector.load %arg8[%c0_10, %c0_11] : memref<2x128xf32, #tpu.memory_space<vmem>>, vector<2x128xf32>
      tpu.vector_store %arg8[%c0_10, %c0_11], %18 {strides = array<i32>} : memref<2x128xf32, #tpu.memory_space<vmem>>, vector<2x128xf32>,
    } else {
    }
    %c0_i32_2 = arith.constant 0 : i32
    %5 = arith.cmpi eq, %arg0, %c0_i32_2 : i32
    %6 = arith.extui %5 : i1 to i32
    %c0_i32_3 = arith.constant 0 : i32
    %7 = arith.cmpi ne, %6, %c0_i32_3 : i32
    scf.if %7 {
      %c0 = arith.constant 0 : index
      %c0_8 = arith.constant 0 : index
      %16 = vector.load %arg9[%c0, %c0_8] : memref<2x128xf32, #tpu.memory_space<vmem>>, vector<2x128xf32>
      %c0_9 = arith.constant 0 : index
      %c0_10 = arith.constant 0 : index
      %17 = vector.load %arg2[%c0_9, %c0_10] : memref<2x1024xf32, #tpu.memory_space<vmem>>, vector<2x1024xf32>
      %18 = arith.truncf %17 : vector<2x1024xf32> to vector<2x1024xbf16>
      %c0_11 = arith.constant 0 : index
      %c0_12 = arith.constant 0 : index
      %19 = vector.load %arg4[%c0_11, %c0_12] : memref<1024x128xbf16, #tpu.memory_space<vmem>>, vector<1024x128xbf16>
      %cst = arith.constant dense<0.000000e+00> : vector<2x128xf32>
      %20 = tpu.matmul %18, %19, %cst {dimension_numbers = #tpu.dot_dimension_numbers<[1], [0], [0], [1], [0, 0, 1, 1], [], []>} : vector<2x1024xbf16>, vector<1024x128xbf16>, vector<2x128xf32> -> vector<2x128xf32>
      %21 = arith.addf %16, %20 : vector<2x128xf32>
      %c0_13 = arith.constant 0 : index
      %c0_14 = arith.constant 0 : index
      %22 = vector.load %arg9[%c0_13, %c0_14] : memref<2x128xf32, #tpu.memory_space<vmem>>, vector<2x128xf32>
      tpu.vector_store %arg9[%c0_13, %c0_14], %21 {strides = array<i32>} : memref<2x128xf32, #tpu.memory_space<vmem>>, vector<2x128xf32>,
    } else {
    }
    %c0_i32_4 = arith.constant 0 : i32
    %8 = arith.cmpi eq, %arg0, %c0_i32_4 : i32
    %c1_i32 = arith.constant 1 : i32
    %9 = arith.cmpi eq, %arg1, %c1_i32 : i32
    %10 = arith.andi %8, %9 : i1
    %11 = arith.extui %10 : i1 to i32
    %c0_i32_5 = arith.constant 0 : i32
    %12 = arith.cmpi ne, %11, %c0_i32_5 : i32
    scf.if %12 {
      %c0 = arith.constant 0 : index
      %c0_8 = arith.constant 0 : index
      %16 = vector.load %arg9[%c0, %c0_8] : memref<2x128xf32, #tpu.memory_space<vmem>>, vector<2x128xf32>
      %cst = arith.constant 0.000000e+00 : f32
      %17 = vector.broadcast %cst : f32 to vector<2x128xf32>
      %18 = arith.maximumf %16, %17 : vector<2x128xf32>
      %c0_9 = arith.constant 0 : index
      %c0_10 = arith.constant 0 : index
      %19 = vector.load %arg3[%c0_9, %c0_10] : memref<2x32xf32, #tpu.memory_space<vmem>>, vector<2x32xf32>
      %20 = arith.truncf %19 : vector<2x32xf32> to vector<2x32xbf16>
      %c0_11 = arith.constant 0 : index
      %c0_12 = arith.constant 0 : index
      %21 = vector.load %arg5[%c0_11, %c0_12] : memref<32x128xbf16, #tpu.memory_space<vmem>>, vector<32x128xbf16>
      %cst_13 = arith.constant dense<0.000000e+00> : vector<2x128xf32>
      %22 = tpu.matmul %20, %21, %cst_13 {dimension_numbers = #tpu.dot_dimension_numbers<[1], [0], [0], [1], [0, 0, 1, 1], [], []>} : vector<2x32xbf16>, vector<32x128xbf16>, vector<2x128xf32> -> vector<2x128xf32>
      %cst_14 = arith.constant 0.000000e+00 : f32
      %23 = vector.broadcast %cst_14 : f32 to vector<2x128xf32>
      %24 = arith.maximumf %22, %23 : vector<2x128xf32>
      %25 = arith.mulf %18, %24 : vector<2x128xf32>
      %c0_15 = arith.constant 0 : index
      %c0_16 = arith.constant 0 : index
      %26 = vector.load %arg9[%c0_15, %c0_16] : memref<2x128xf32, #tpu.memory_space<vmem>>, vector<2x128xf32>
      tpu.vector_store %arg9[%c0_15, %c0_16], %25 {strides = array<i32>} : memref<2x128xf32, #tpu.memory_space<vmem>>, vector<2x128xf32>,
      %27 = arith.truncf %25 : vector<2x128xf32> to vector<2x128xbf16>
      %c0_17 = arith.constant 0 : index
      %c0_18 = arith.constant 0 : index
      %28 = vector.load %arg6[%c0_17, %c0_18] : memref<128x128xbf16, #tpu.memory_space<vmem>>, vector<128x128xbf16>
      %cst_19 = arith.constant dense<0.000000e+00> : vector<2x128xf32>
      %29 = tpu.matmul %27, %28, %cst_19 {dimension_numbers = #tpu.dot_dimension_numbers<[1], [0], [0], [1], [0, 0, 1, 1], [], []>} : vector<2x128xbf16>, vector<128x128xbf16>, vector<2x128xf32> -> vector<2x128xf32>
      %c0_20 = arith.constant 0 : index
      %c0_21 = arith.constant 0 : index
      %30 = vector.load %arg7[%c0_20, %c0_21] : memref<2x128xf32, #tpu.memory_space<vmem>>, vector<2x128xf32>
      tpu.vector_store %arg7[%c0_20, %c0_21], %29 {strides = array<i32>} : memref<2x128xf32, #tpu.memory_space<vmem>>, vector<2x128xf32>,
    } else {
    }
    %c1_i32_6 = arith.constant 1 : i32
    %13 = arith.cmpi eq, %arg0, %c1_i32_6 : i32
    %14 = arith.extui %13 : i1 to i32
    %c0_i32_7 = arith.constant 0 : i32
    %15 = arith.cmpi ne, %14, %c0_i32_7 : i32
    scf.if %15 {
      %c0 = arith.constant 0 : index
      %c0_8 = arith.constant 0 : index
      %16 = vector.load %arg9[%c0, %c0_8] : memref<2x128xf32, #tpu.memory_space<vmem>>, vector<2x128xf32>
      %17 = arith.truncf %16 : vector<2x128xf32> to vector<2x128xbf16>
      %c0_9 = arith.constant 0 : index
      %c0_10 = arith.constant 0 : index
      %18 = vector.load %arg4[%c0_9, %c0_10] : memref<1024x128xbf16, #tpu.memory_space<vmem>>, vector<512x128xbf16>
      %cst = arith.constant dense<0.000000e+00> : vector<2x512xf32>
      %19 = tpu.matmul %17, %18, %cst {dimension_numbers = #tpu.dot_dimension_numbers<[1], [1], [0], [0], [0, 0, 1, 0], [], []>} : vector<2x128xbf16>, vector<512x128xbf16>, vector<2x512xf32> -> vector<2x512xf32>
      %c0_11 = arith.constant 0 : index
      %c0_12 = arith.constant 0 : index
      %20 = vector.load %arg2[%c0_11, %c0_12] : memref<2x1024xf32, #tpu.memory_space<vmem>>, vector<2x512xf32>
      %21 = arith.subf %19, %20 : vector<2x512xf32>
      %22 = arith.mulf %21, %21 : vector<2x512xf32>
      %c0_13 = arith.constant 0 : index
      %c0_14 = arith.constant 0 : index
      %23 = vector.load %arg8[%c0_13, %c0_14] : memref<2x128xf32, #tpu.memory_space<vmem>>, vector<2x128xf32>
      %24 = vector.extract_strided_slice %22 {offsets = [0, 0], sizes = [2, 128], strides = [1, 1]} : vector<2x512xf32> to vector<2x128xf32>
      %25 = arith.addf %23, %24 : vector<2x128xf32>
      %c0_15 = arith.constant 0 : index
      %c0_16 = arith.constant 0 : index
      %26 = vector.load %arg8[%c0_15, %c0_16] : memref<2x128xf32, #tpu.memory_space<vmem>>, vector<2x128xf32>
      tpu.vector_store %arg8[%c0_15, %c0_16], %25 {strides = array<i32>} : memref<2x128xf32, #tpu.memory_space<vmem>>, vector<2x128xf32>,
      %c0_17 = arith.constant 0 : index
      %c0_18 = arith.constant 0 : index
      %27 = vector.load %arg8[%c0_17, %c0_18] : memref<2x128xf32, #tpu.memory_space<vmem>>, vector<2x128xf32>
      %28 = vector.extract_strided_slice %22 {offsets = [0, 128], sizes = [2, 128], strides = [1, 1]} : vector<2x512xf32> to vector<2x128xf32>
      %29 = arith.addf %27, %28 : vector<2x128xf32>
      %c0_19 = arith.constant 0 : index
      %c0_20 = arith.constant 0 : index
      %30 = vector.load %arg8[%c0_19, %c0_20] : memref<2x128xf32, #tpu.memory_space<vmem>>, vector<2x128xf32>
      tpu.vector_store %arg8[%c0_19, %c0_20], %29 {strides = array<i32>} : memref<2x128xf32, #tpu.memory_space<vmem>>, vector<2x128xf32>,
      %c0_21 = arith.constant 0 : index
      %c0_22 = arith.constant 0 : index
      %31 = vector.load %arg8[%c0_21, %c0_22] : memref<2x128xf32, #tpu.memory_space<vmem>>, vector<2x128xf32>
      %32 = vector.extract_strided_slice %22 {offsets = [0, 256], sizes = [2, 128], strides = [1, 1]} : vector<2x512xf32> to vector<2x128xf32>
      %33 = arith.addf %31, %32 : vector<2x128xf32>
      %c0_23 = arith.constant 0 : index
      %c0_24 = arith.constant 0 : index
      %34 = vector.load %arg8[%c0_23, %c0_24] : memref<2x128xf32, #tpu.memory_space<vmem>>, vector<2x128xf32>
      tpu.vector_store %arg8[%c0_23, %c0_24], %33 {strides = array<i32>} : memref<2x128xf32, #tpu.memory_space<vmem>>, vector<2x128xf32>,
      %c0_25 = arith.constant 0 : index
      %c0_26 = arith.constant 0 : index
      %35 = vector.load %arg8[%c0_25, %c0_26] : memref<2x128xf32, #tpu.memory_space<vmem>>, vector<2x128xf32>
      %36 = vector.extract_strided_slice %22 {offsets = [0, 384], sizes = [2, 128], strides = [1, 1]} : vector<2x512xf32> to vector<2x128xf32>
      %37 = arith.addf %35, %36 : vector<2x128xf32>
      %c0_27 = arith.constant 0 : index
      %c0_28 = arith.constant 0 : index
      %38 = vector.load %arg8[%c0_27, %c0_28] : memref<2x128xf32, #tpu.memory_space<vmem>>, vector<2x128xf32>
      tpu.vector_store %arg8[%c0_27, %c0_28], %37 {strides = array<i32>} : memref<2x128xf32, #tpu.memory_space<vmem>>, vector<2x128xf32>,
      %c512 = arith.constant 512 : index
      %c0_29 = arith.constant 0 : index
      %39 = vector.load %arg4[%c512, %c0_29] : memref<1024x128xbf16, #tpu.memory_space<vmem>>, vector<512x128xbf16>
      %cst_30 = arith.constant dense<0.000000e+00> : vector<2x512xf32>
      %40 = tpu.matmul %17, %39, %cst_30 {dimension_numbers = #tpu.dot_dimension_numbers<[1], [1], [0], [0], [0, 0, 1, 0], [], []>} : vector<2x128xbf16>, vector<512x128xbf16>, vector<2x512xf32> -> vector<2x512xf32>
      %c0_31 = arith.constant 0 : index
      %c512_32 = arith.constant 512 : index
      %41 = vector.load %arg2[%c0_31, %c512_32] : memref<2x1024xf32, #tpu.memory_space<vmem>>, vector<2x512xf32>
      %42 = arith.subf %40, %41 : vector<2x512xf32>
      %43 = arith.mulf %42, %42 : vector<2x512xf32>
      %c0_33 = arith.constant 0 : index
      %c0_34 = arith.constant 0 : index
      %44 = vector.load %arg8[%c0_33, %c0_34] : memref<2x128xf32, #tpu.memory_space<vmem>>, vector<2x128xf32>
      %45 = vector.extract_strided_slice %43 {offsets = [0, 0], sizes = [2, 128], strides = [1, 1]} : vector<2x512xf32> to vector<2x128xf32>
      %46 = arith.addf %44, %45 : vector<2x128xf32>
      %c0_35 = arith.constant 0 : index
      %c0_36 = arith.constant 0 : index
      %47 = vector.load %arg8[%c0_35, %c0_36] : memref<2x128xf32, #tpu.memory_space<vmem>>, vector<2x128xf32>
      tpu.vector_store %arg8[%c0_35, %c0_36], %46 {strides = array<i32>} : memref<2x128xf32, #tpu.memory_space<vmem>>, vector<2x128xf32>,
      %c0_37 = arith.constant 0 : index
      %c0_38 = arith.constant 0 : index
      %48 = vector.load %arg8[%c0_37, %c0_38] : memref<2x128xf32, #tpu.memory_space<vmem>>, vector<2x128xf32>
      %49 = vector.extract_strided_slice %43 {offsets = [0, 128], sizes = [2, 128], strides = [1, 1]} : vector<2x512xf32> to vector<2x128xf32>
      %50 = arith.addf %48, %49 : vector<2x128xf32>
      %c0_39 = arith.constant 0 : index
      %c0_40 = arith.constant 0 : index
      %51 = vector.load %arg8[%c0_39, %c0_40] : memref<2x128xf32, #tpu.memory_space<vmem>>, vector<2x128xf32>
      tpu.vector_store %arg8[%c0_39, %c0_40], %50 {strides = array<i32>} : memref<2x128xf32, #tpu.memory_space<vmem>>, vector<2x128xf32>,
      %c0_41 = arith.constant 0 : index
      %c0_42 = arith.constant 0 : index
      %52 = vector.load %arg8[%c0_41, %c0_42] : memref<2x128xf32, #tpu.memory_space<vmem>>, vector<2x128xf32>
      %53 = vector.extract_strided_slice %43 {offsets = [0, 256], sizes = [2, 128], strides = [1, 1]} : vector<2x512xf32> to vector<2x128xf32>
      %54 = arith.addf %52, %53 : vector<2x128xf32>
      %c0_43 = arith.constant 0 : index
      %c0_44 = arith.constant 0 : index
      %55 = vector.load %arg8[%c0_43, %c0_44] : memref<2x128xf32, #tpu.memory_space<vmem>>, vector<2x128xf32>
      tpu.vector_store %arg8[%c0_43, %c0_44], %54 {strides = array<i32>} : memref<2x128xf32, #tpu.memory_space<vmem>>, vector<2x128xf32>,
      %c0_45 = arith.constant 0 : index
      %c0_46 = arith.constant 0 : index
      %56 = vector.load %arg8[%c0_45, %c0_46] : memref<2x128xf32, #tpu.memory_space<vmem>>, vector<2x128xf32>
      %57 = vector.extract_strided_slice %43 {offsets = [0, 384], sizes = [2, 128], strides = [1, 1]} : vector<2x512xf32> to vector<2x128xf32>
      %58 = arith.addf %56, %57 : vector<2x128xf32>
      %c0_47 = arith.constant 0 : index
      %c0_48 = arith.constant 0 : index
      %59 = vector.load %arg8[%c0_47, %c0_48] : memref<2x128xf32, #tpu.memory_space<vmem>>, vector<2x128xf32>
      tpu.vector_store %arg8[%c0_47, %c0_48], %58 {strides = array<i32>} : memref<2x128xf32, #tpu.memory_space<vmem>>, vector<2x128xf32>,
    } else {
    }
    return
  }
  func.func @transform_0(%arg0: i32, %arg1: i32) -> (i32, i32) {
    %c0_i32 = arith.constant 0 : i32
    %c0_i32_0 = arith.constant 0 : i32
    return %c0_i32, %arg1 : i32, i32
  }
  func.func @transform_1(%arg0: i32, %arg1: i32) -> (i32, i32) {
    %c0_i32 = arith.constant 0 : i32
    %c0_i32_0 = arith.constant 0 : i32
    %c0_i32_1 = arith.constant 0 : i32
    return %c0_i32, %c0_i32_0 : i32, i32
  }
  func.func @transform_2(%arg0: i32, %arg1: i32) -> (i32, i32) {
    %c2_i32 = arith.constant 2 : i32
    %0 = arith.muli %arg0, %c2_i32 : i32
    %1 = arith.addi %0, %arg1 : i32
    %c0_i32 = arith.constant 0 : i32
    %c0_i32_0 = arith.constant 0 : i32
    return %1, %c0_i32 : i32, i32
  }
  func.func @transform_3(%arg0: i32, %arg1: i32) -> (i32, i32) {
    %c0_i32 = arith.constant 0 : i32
    %c0_i32_0 = arith.constant 0 : i32
    %c0_i32_1 = arith.constant 0 : i32
    return %c0_i32, %c0_i32_0 : i32, i32
  }
  func.func @transform_4(%arg0: i32, %arg1: i32) -> (i32, i32) {
    %c0_i32 = arith.constant 0 : i32
    %c0_i32_0 = arith.constant 0 : i32
    %c0_i32_1 = arith.constant 0 : i32
    return %c0_i32, %c0_i32_0 : i32, i32
  }
  func.func @transform_5(%arg0: i32, %arg1: i32) -> (i32, i32) {
    %c0_i32 = arith.constant 0 : i32
    %c0_i32_0 = arith.constant 0 : i32
    %c0_i32_1 = arith.constant 0 : i32
    return %c0_i32, %c0_i32_0 : i32, i32
  }
  func.func @transform_6(%arg0: i32, %arg1: i32) -> (i32, i32) {
    %c0_i32 = arith.constant 0 : i32
    %c0_i32_0 = arith.constant 0 : i32
    %c0_i32_1 = arith.constant 0 : i32
    return %c0_i32, %c0_i32_0 : i32, i32
  }
}

</mosaic_0001>

<llo_original>
// kernel: tpu_custom_call.1
$region0: #{tpu_custom_call.1}
  #allocation0 [shape = 'u32[]', space=smem, size = 0x4, offset = 0x4, fixed_abs, tag = 'smem constant byte address 0x4 - core index']
  #allocation1 [shape = 'u32[144,128]{1,0:T(1,128)}', space=vmem, size = 0x12000, scoped, tag = 'internal scratch']
  #allocation2 [shape = 'f32[2,128]{1,0:T(2,128)}', space=vmem, size = 0x400, scoped, tag = 'scratch operand']
  %s0 = inlined_call_operand.hbm [shape: f32[2,2048], index: 0, kind: input, shape index: {}]
  %s1 = inlined_call_operand.hbm [shape: f32[2,32], index: 1, kind: input, shape index: {}]
  %s2 = inlined_call_operand.hbm [shape: bf16[4096,128], index: 2, kind: input, shape index: {}]
  %s3 = inlined_call_operand.hbm [shape: bf16[32,128], index: 3, kind: input, shape index: {}]
  %s4 = inlined_call_operand.hbm [shape: bf16[128,128], index: 4, kind: input, shape index: {}]
  %s5 = inlined_call_operand.hbm [shape: f32[2,128], index: 5, kind: output, shape index: {0}]
  %s6 = inlined_call_operand.hbm [shape: f32[2,128], index: 6, kind: output, shape index: {1}]
  %7 = xla_tuple %s5, %s6
  %s8 = sld [smem:[#allocation0]]
  $region97: #{tpu_custom_call.1} parent=0
    _
  %s10 = ssub.s32 1, %s8
  %s11 = scalar_select 0, %s10, %s8
  $region1: #{tpu_custom_call.1} parent=0
    #allocation3 [shape = 'u8[16384]{0}', space=vmem, size = 0x4000, scoped, tag = 'input window, operand 0']
    #allocation4 [shape = 's32[2]{0}', space=sflag, size = 0x8, scoped, tag = 'scoped memory for tpu_custom_call.1']
    #allocation5 [shape = 's32[2]{0}', space=sflag, size = 0x8, scoped, tag = 'scoped memory for tpu_custom_call.1']
    #allocation6 [shape = 'u8[1024]{0}', space=vmem, size = 0x400, scoped, tag = 'input window, operand 1, single buffered']
    #allocation7 [shape = 's32[1]{0}', space=sflag, size = 0x4, scoped, tag = 'scoped memory for tpu_custom_call.1']
    #allocation8 [shape = 'u8[524288]{0}', space=vmem, size = 0x80000, scoped, tag = 'input window, operand 2']
    #allocation9 [shape = 'u8[8192]{0}', space=vmem, size = 0x2000, scoped, tag = 'input window, operand 3, single buffered']
    #allocation10 [shape = 'u8[32768]{0}', space=vmem, size = 0x8000, scoped, tag = 'input window, operand 4, single buffered']
    #allocation11 [shape = 's32[1]{0}', space=sflag, size = 0x4, scoped, tag = 'scoped memory for tpu_custom_call.1']
    #allocation12 [shape = 'u8[1024]{0}', space=vmem, size = 0x400, scoped, tag = 'output window, operand 0, single buffered']
    #allocation13 [shape = 'u8[1024]{0}', space=vmem, size = 0x400, scoped, tag = 'output window, operand 1, single buffered']
    #allocation14 [shape = 's32[1]{0}', space=sflag, size = 0x4, scoped, tag = 'scoped memory for tpu_custom_call.1']
    %12 = vsyncpa [#allocation4], 0
    %s13 = scalar_lea.sflag [#allocation4], 1
    %14 = vsyncpa %s13, 0
    %15 = vsyncpa [#allocation7], 0
    %16 = vsyncpa [#allocation11], 0
    %17 = vsyncpa [#allocation5], 0
    %18 = vsyncpa [#allocation14], 0
    loop: start=0, step=1, limit=6
    $region2: #{tpu_custom_call.1} parent=1 // loop_pre_header
      _
    $region3: #{tpu_custom_call.1} parent=1 // loop_header
      %s20 = sphi 0, %s24
      %p21 = scmp.ge.s32.totalorder %s20, 6
      %s27 = sphi 0, %s39
      %s28 = sphi 0, %s35
      %s29 = sphi 0, %s27
      %s30 = sphi 0, %s28
      %s31 = sphi 0, %s29
      %s32 = sphi 0, %s30
      %s42 = sphi 0, %s44
      %s45 = sphi 0, %s42
      %s46 = sphi 0, %s45
      %s62 = sphi 0, %s46
      %s66 = sphi 0, %s66
      %s68 = sphi 0, %s66
      %s69 = sphi 0, %s68
      %s83 = sphi 0, %s69
      %s93 = sphi 0, %s95
      %s96 = sphi 0, %s93
      %s97 = sphi 0, %s96
      %s113 = sphi 0, %s97
      %s117 = sphi 0, %s117
      %s119 = sphi 0, %s117
      %s120 = sphi 0, %s119
      %s134 = sphi 0, %s120
      %s138 = sphi 0, %s138
      %s140 = sphi 0, %s138
      %s141 = sphi 0, %s140
      %s155 = sphi 0, %s141
      %s159 = sphi 0, %s159
      %s161 = sphi 0, %s159
      %s162 = sphi 0, %s161
      %s176 = sphi 0, %s162
      %s180 = sphi 0, %s180
      %s182 = sphi 0, %s180
      %s183 = sphi 0, %s182
      %s197 = sphi 0, %s183
    $region4: #{tpu_custom_call.1} parent=1 // loop_header_branch
      %23 = sbr.rel (%p21) target = $region8
    $region5: #{tpu_custom_call.1} parent=1 // loop_body
      %s25 = ssub.s32 %s20, 1
      %s26 = ssub.s32 %s20, 2
      %s33 = sadd.s32 1, %s28
      %p34 = scmp.ge.s32.totalorder %s33, 2
      %s35 = scalar_select %p34, 0, %s33
      %s36 = sadd.s32 1, %s27
      %s37 = scalar_select %p34, %s36, %s27
      %p38 = scmp.ge.s32.totalorder %s37, 2
      %s39 = scalar_select %p38, 0, %s37
      %s40 = ssub.s32 %s28, %s35
      %p41 = scmp.eq.s32.totalorder %s40, 0
      %s43 = sadd.s32 %s42, 1
      %s44 = scalar_select %p41, %s42, %s43
      %p47 = pneg %p41
      %p48 = scmp.eq.s32.totalorder %s20, 3
      %p49 = por %p47, %p48
      %p50 = scmp.ne.s32.totalorder %s42, %s45
      %p51 = scmp.eq.s32.totalorder %s20, 0
      %p52 = por %p50, %p51
      %p53 = scmp.ne.s32.totalorder %s42, %s45
      %p54 = scmp.eq.s32.totalorder %s25, 3
      %p55 = por %p53, %p54
      %p56 = scmp.ne.s32.totalorder %s45, %s46
      %p57 = scmp.eq.s32.totalorder %s25, 0
      %p58 = por %p56, %p57
      %p59 = scmp.ne.s32.totalorder %s45, %s46
      %p60 = scmp.eq.s32.totalorder %s26, 3
      %p61 = por %p59, %p60
      %p63 = scmp.ne.s32.totalorder %s46, %s62
      %p64 = scmp.eq.s32.totalorder %s26, 0
      %p65 = por %p63, %p64
      %s67 = sadd.s32 %s66, 1
      %p70 = scmp.eq.s32.totalorder %s20, 3
      %p71 = scmp.ne.s32.totalorder %s66, %s68
      %p72 = scmp.eq.s32.totalorder %s20, 0
      %p73 = por %p71, %p72
      %p74 = scmp.ne.s32.totalorder %s66, %s68
      %p75 = scmp.eq.s32.totalorder %s25, 3
      %p76 = por %p74, %p75
      %p77 = scmp.ne.s32.totalorder %s68, %s69
      %p78 = scmp.eq.s32.totalorder %s25, 0
      %p79 = por %p77, %p78
      %p80 = scmp.ne.s32.totalorder %s68, %s69
      %p81 = scmp.eq.s32.totalorder %s26, 3
      %p82 = por %p80, %p81
      %p84 = scmp.ne.s32.totalorder %s69, %s83
      %p85 = scmp.eq.s32.totalorder %s26, 0
      %p86 = por %p84, %p85
      %s87 = smul.u32 %s27, 2
      %s88 = sadd.s32 %s87, %s28
      %s89 = smul.u32 %s39, 2
      %s90 = sadd.s32 %s89, %s35
      %s91 = ssub.s32 %s88, %s90
      %p92 = scmp.eq.s32.totalorder %s91, 0
      %s94 = sadd.s32 %s93, 1
      %s95 = scalar_select %p92, %s93, %s94
      %p98 = pneg %p92
      %p99 = scmp.eq.s32.totalorder %s20, 3
      %p100 = por %p98, %p99
      %p101 = scmp.ne.s32.totalorder %s93, %s96
      %p102 = scmp.eq.s32.totalorder %s20, 0
      %p103 = por %p101, %p102
      %p104 = scmp.ne.s32.totalorder %s93, %s96
      %p105 = scmp.eq.s32.totalorder %s25, 3
      %p106 = por %p104, %p105
      %p107 = scmp.ne.s32.totalorder %s96, %s97
      %p108 = scmp.eq.s32.totalorder %s25, 0
      %p109 = por %p107, %p108
      %p110 = scmp.ne.s32.totalorder %s96, %s97
      %p111 = scmp.eq.s32.totalorder %s26, 3
      %p112 = por %p110, %p111
      %p114 = scmp.ne.s32.totalorder %s97, %s113
      %p115 = scmp.eq.s32.totalorder %s26, 0
      %p116 = por %p114, %p115
      %s118 = sadd.s32 %s117, 1
      %p121 = scmp.eq.s32.totalorder %s20, 3
      %p122 = scmp.ne.s32.totalorder %s117, %s119
      %p123 = scmp.eq.s32.totalorder %s20, 0
      %p124 = por %p122, %p123
      %p125 = scmp.ne.s32.totalorder %s117, %s119
      %p126 = scmp.eq.s32.totalorder %s25, 3
      %p127 = por %p125, %p126
      %p128 = scmp.ne.s32.totalorder %s119, %s120
      %p129 = scmp.eq.s32.totalorder %s25, 0
      %p130 = por %p128, %p129
      %p131 = scmp.ne.s32.totalorder %s119, %s120
      %p132 = scmp.eq.s32.totalorder %s26, 3
      %p133 = por %p131, %p132
      %p135 = scmp.ne.s32.totalorder %s120, %s134
      %p136 = scmp.eq.s32.totalorder %s26, 0
      %p137 = por %p135, %p136
      %s139 = sadd.s32 %s138, 1
      %p142 = scmp.eq.s32.totalorder %s20, 3
      %p143 = scmp.ne.s32.totalorder %s138, %s140
      %p144 = scmp.eq.s32.totalorder %s20, 0
      %p145 = por %p143, %p144
      %p146 = scmp.ne.s32.totalorder %s138, %s140
      %p147 = scmp.eq.s32.totalorder %s25, 3
      %p148 = por %p146, %p147
      %p149 = scmp.ne.s32.totalorder %s140, %s141
      %p150 = scmp.eq.s32.totalorder %s25, 0
      %p151 = por %p149, %p150
      %p152 = scmp.ne.s32.totalorder %s140, %s141
      %p153 = scmp.eq.s32.totalorder %s26, 3
      %p154 = por %p152, %p153
      %p156 = scmp.ne.s32.totalorder %s141, %s155
      %p157 = scmp.eq.s32.totalorder %s26, 0
      %p158 = por %p156, %p157
      %s160 = sadd.s32 %s159, 1
      %p163 = scmp.eq.s32.totalorder %s20, 3
      %p164 = scmp.ne.s32.totalorder %s159, %s161
      %p165 = scmp.eq.s32.totalorder %s20, 0
      %p166 = por %p164, %p165
      %p167 = scmp.ne.s32.totalorder %s159, %s161
      %p168 = scmp.eq.s32.totalorder %s25, 3
      %p169 = por %p167, %p168
      %p170 = scmp.ne.s32.totalorder %s161, %s162
      %p171 = scmp.eq.s32.totalorder %s25, 0
      %p172 = por %p170, %p171
      %p173 = scmp.ne.s32.totalorder %s161, %s162
      %p174 = scmp.eq.s32.totalorder %s26, 3
      %p175 = por %p173, %p174
      %p177 = scmp.ne.s32.totalorder %s162, %s176
      %p178 = scmp.eq.s32.totalorder %s26, 0
      %p179 = por %p177, %p178
      %s181 = sadd.s32 %s180, 1
      %p184 = scmp.eq.s32.totalorder %s20, 3
      %p185 = scmp.ne.s32.totalorder %s180, %s182
      %p186 = scmp.eq.s32.totalorder %s20, 0
      %p187 = por %p185, %p186
      %p188 = scmp.ne.s32.totalorder %s180, %s182
      %p189 = scmp.eq.s32.totalorder %s25, 3
      %p190 = por %p188, %p189
      %p191 = scmp.ne.s32.totalorder %s182, %s183
      %p192 = scmp.eq.s32.totalorder %s25, 0
      %p193 = por %p191, %p192
      %p194 = scmp.ne.s32.totalorder %s182, %s183
      %p195 = scmp.eq.s32.totalorder %s26, 3
      %p196 = por %p194, %p195
      %p198 = scmp.ne.s32.totalorder %s183, %s197
      %p199 = scmp.eq.s32.totalorder %s26, 0
      %p200 = por %p198, %p199
      %p201 = scmp.le.s32.totalorder 1, %s20
      %p202 = scmp.lt.s32.totalorder %s20, 5
      %p203 = pnand %p201, %p202
      %p204 = pneg %p203
      // Predicated region
      $region9: #{tpu_custom_call.1} parent=5 // pred_check
        _
      $region10: #{tpu_custom_call.1} parent=5 // pred_check_branch
        %206 = sbr.rel (%p203) target = $region12
      $region11: #{tpu_custom_call.1} parent=5 // pred_region
        %s207 = ssub.s32 %s20, 1
        // Predicated region
        $region13: #{tpu_custom_call.1} parent=11 // pred_check
          %p208 = pneg %p79
        $region14: #{tpu_custom_call.1} parent=11 // pred_check_branch
          %210 = sbr.rel (%p208) target = $region16
        $region15: #{tpu_custom_call.1} parent=11 // pred_region
          %s212 = ssub.s32 32, 32
          %213 = vsyncadd [#allocation7], %s212
          %s215 = sshll.u32 [#allocation6], 4
          %s216 = int_to_ptr.vmem [resolvable:$true] %s215
          %218 = dma.hbm_to_vmem [thread:$0]  %s1, 32, %s216, [#allocation7]
        $region16: #{tpu_custom_call.1} parent=11 // pred_fallthru
          _
        // Predicated region
        $region17: #{tpu_custom_call.1} parent=11 // pred_check
          %p219 = pneg %p130
        $region18: #{tpu_custom_call.1} parent=11 // pred_check_branch
          %221 = sbr.rel (%p219) target = $region20
        $region19: #{tpu_custom_call.1} parent=11 // pred_region
          %s223 = ssub.s32 256, 256
          %224 = vsyncadd [#allocation7], %s223
          %s225 = sshll.u32 [#allocation9], 4
          %s226 = int_to_ptr.vmem [resolvable:$true] %s225
          %231 = dma.hbm_to_vmem [thread:$0]  %s3, 256, %s226, [#allocation7], 64, 64, 4
        $region20: #{tpu_custom_call.1} parent=11 // pred_fallthru
          _
        // Predicated region
        $region21: #{tpu_custom_call.1} parent=11 // pred_check
          %p232 = pneg %p151
        $region22: #{tpu_custom_call.1} parent=11 // pred_check_branch
          %234 = sbr.rel (%p232) target = $region24
        $region23: #{tpu_custom_call.1} parent=11 // pred_region
          %s236 = ssub.s32 1024, 1024
          %237 = vsyncadd [#allocation11], %s236
          %s238 = sshll.u32 [#allocation10], 4
          %s239 = int_to_ptr.vmem [resolvable:$true] %s238
          %244 = dma.hbm_to_vmem [thread:$0]  %s4, 1024, %s239, [#allocation11], 64, 64, 4
        $region24: #{tpu_custom_call.1} parent=11 // pred_fallthru
          _
      $region12: #{tpu_custom_call.1} parent=5 // pred_fallthru
        _
      %p245 = scmp.lt.s32.totalorder %s20, 4
      // Predicated region
      $region25: #{tpu_custom_call.1} parent=5 // pred_check
        %p246 = pneg %p245
      $region26: #{tpu_custom_call.1} parent=5 // pred_check_branch
        %248 = sbr.rel (%p246) target = $region28
      $region27: #{tpu_custom_call.1} parent=5 // pred_region
        // Predicated region
        $region29: #{tpu_custom_call.1} parent=27 // pred_check
          %p249 = pneg %p52
        $region30: #{tpu_custom_call.1} parent=27 // pred_check_branch
          %251 = sbr.rel (%p249) target = $region32
        $region31: #{tpu_custom_call.1} parent=27 // pred_region
          %s252 = sand.u32 %s20, 1
          %s253 = scalar_lea.sflag [#allocation4], %s252
          %s254 = sand.u32 %s42, 1
          %s255 = smul.addr %s254, 16
          %s256 = scalar_lea.vmem [#allocation3], %s255
          %s257 = smul.u32 8, %s28
          %s259 = ssub.s32 256, 256
          %260 = vsyncadd %s253, %s259
          %s261 = smul.addr %s257, 32
          %s262 = scalar_lea.hbm %s0, %s261
          %s264 = sshll.u32 %s256, 4
          %s265 = int_to_ptr.vmem [resolvable:$true] %s264
          %267 = dma.hbm_to_vmem [thread:$0]  %s262, 256, %s265, %s253
        $region32: #{tpu_custom_call.1} parent=27 // pred_fallthru
          _
        // Predicated region
        $region33: #{tpu_custom_call.1} parent=27 // pred_check
          %p268 = pneg %p103
        $region34: #{tpu_custom_call.1} parent=27 // pred_check_branch
          %270 = sbr.rel (%p268) target = $region36
        $region35: #{tpu_custom_call.1} parent=27 // pred_region
          %s271 = sand.u32 %s20, 1
          %s272 = scalar_lea.sflag [#allocation4], %s271
          %s273 = sand.u32 %s93, 1
          %s274 = smul.addr %s273, 512
          %s275 = scalar_lea.vmem [#allocation8], %s274
          %s276 = smul.u32 %s27, 2
          %s277 = sadd.s32 %s276, %s28
          %s278 = smul.u32 128, %s277
          %s280 = ssub.s32 8192, 8192
          %281 = vsyncadd %s272, %s280
          %s282 = smul.addr %s278, 64
          %s283 = scalar_lea.hbm %s2, %s282
          %s284 = sshll.u32 %s275, 4
          %s285 = int_to_ptr.vmem [resolvable:$true] %s284
          %290 = dma.hbm_to_vmem [thread:$0]  %s283, 8192, %s285, %s272, 64, 64, 4
        $region36: #{tpu_custom_call.1} parent=27 // pred_fallthru
          _
      $region28: #{tpu_custom_call.1} parent=5 // pred_fallthru
        _
      %p291 = scmp.le.s32.totalorder 1, %s20
      %p292 = scmp.lt.s32.totalorder %s20, 5
      %p293 = pnand %p291, %p292
      %p294 = pneg %p293
      // Predicated region
      $region37: #{tpu_custom_call.1} parent=5 // pred_check
        _
      $region38: #{tpu_custom_call.1} parent=5 // pred_check_branch
        %296 = sbr.rel (%p293) target = $region40
      $region39: #{tpu_custom_call.1} parent=5 // pred_region
        %s297 = ssub.s32 %s20, 1
        %s298 = sand.u32 %s25, 1
        %s299 = scalar_lea.sflag [#allocation4], %s298
        %s300 = sand.u32 %s45, 1
        %s301 = smul.addr %s300, 16
        %s302 = scalar_lea.vmem [#allocation3], %s301
        // Predicated region
        $region41: #{tpu_custom_call.1} parent=39 // pred_check
          %p303 = pneg %p58
        $region42: #{tpu_custom_call.1} parent=39 // pred_check_branch
          %305 = sbr.rel (%p303) target = $region44
        $region43: #{tpu_custom_call.1} parent=39 // pred_region
          %306 = dma.done %s299, 256
        $region44: #{tpu_custom_call.1} parent=39 // pred_fallthru
          _
        // Predicated region
        $region45: #{tpu_custom_call.1} parent=39 // pred_check
          %p307 = pneg %p79
        $region46: #{tpu_custom_call.1} parent=39 // pred_check_branch
          %309 = sbr.rel (%p307) target = $region48
        $region47: #{tpu_custom_call.1} parent=39 // pred_region
          %310 = dma.done [#allocation7], 32
        $region48: #{tpu_custom_call.1} parent=39 // pred_fallthru
          _
        %s311 = sand.u32 %s25, 1
        %s312 = scalar_lea.sflag [#allocation4], %s311
        %s313 = sand.u32 %s96, 1
        %s314 = smul.addr %s313, 512
        %s315 = scalar_lea.vmem [#allocation8], %s314
        // Predicated region
        $region49: #{tpu_custom_call.1} parent=39 // pred_check
          %p316 = pneg %p109
        $region50: #{tpu_custom_call.1} parent=39 // pred_check_branch
          %318 = sbr.rel (%p316) target = $region52
        $region51: #{tpu_custom_call.1} parent=39 // pred_region
          %319 = dma.done %s312, 8192
        $region52: #{tpu_custom_call.1} parent=39 // pred_fallthru
          _
        // Predicated region
        $region53: #{tpu_custom_call.1} parent=39 // pred_check
          %p320 = pneg %p130
        $region54: #{tpu_custom_call.1} parent=39 // pred_check_branch
          %322 = sbr.rel (%p320) target = $region56
        $region55: #{tpu_custom_call.1} parent=39 // pred_region
          %323 = dma.done [#allocation7], 256
        $region56: #{tpu_custom_call.1} parent=39 // pred_fallthru
          _
        // Predicated region
        $region57: #{tpu_custom_call.1} parent=39 // pred_check
          %p324 = pneg %p151
        $region58: #{tpu_custom_call.1} parent=39 // pred_check_branch
          %326 = sbr.rel (%p324) target = $region60
        $region59: #{tpu_custom_call.1} parent=39 // pred_region
          %327 = dma.done [#allocation11], 1024
        $region60: #{tpu_custom_call.1} parent=39 // pred_fallthru
          _
        %s328 = sand.u32 %s25, 1
        %s329 = scalar_lea.sflag [#allocation4], %s328
        %s330 = sand.u32 %s45, 1
        %s331 = smul.addr %s330, 16
        %s332 = scalar_lea.vmem [#allocation3], %s331
        %p333 = pneg %p58
        %p334 = pneg %p55
        %p335 = pneg %p79
        %p336 = pneg %p76
        %s337 = sand.u32 %s25, 1
        %s338 = scalar_lea.sflag [#allocation4], %s337
        %s339 = sand.u32 %s96, 1
        %s340 = smul.addr %s339, 512
        %s341 = scalar_lea.vmem [#allocation8], %s340
        %p342 = pneg %p109
        %p343 = pneg %p106
        %p344 = pneg %p130
        %p345 = pneg %p127
        %p346 = pneg %p151
        %p347 = pneg %p148
        %p348 = pneg %p172
        %p349 = pneg %p169
        %p350 = pneg %p193
        %p351 = pneg %p190
        %s352 = smul.u32 8, %s30
        %s353 = smul.u32 %s29, 2
        %s354 = sadd.s32 %s353, %s30
        %s355 = smul.u32 128, %s354
        %p357 = scmp.eq.s32.totalorder %s29, 0
        %p358 = scmp.eq.s32.totalorder %s30, 0
        %p359 = pnand %p357, %p358
        %p360 = pneg %p359
        // Predicated region
        $region61: #{tpu_custom_call.1} parent=39 // pred_check
          _
        $region62: #{tpu_custom_call.1} parent=39 // pred_check_branch
          %362 = sbr.rel (%p359) target = $region64
        $region63: #{tpu_custom_call.1} parent=39 // pred_region
          %363 = vst [vmem:[#allocation2] sm:$0x3] 0.0
          %364 = vst [vmem:[#allocation13] sm:$0x3] 0.0
        $region64: #{tpu_custom_call.1} parent=39 // pred_fallthru
          _
        // Predicated region
        $region65: #{tpu_custom_call.1} parent=39 // pred_check
          %p365 = pneg %p357
        $region66: #{tpu_custom_call.1} parent=39 // pred_check_branch
          %367 = sbr.rel (%p365) target = $region68
        $region67: #{tpu_custom_call.1} parent=39 // pred_region
          %v368 = vld [vmem:[#allocation2] sm:$0x3]
          %v369 = vld [vmem:[%s302] sm:$0xff]
          %v370 = vld [vmem:[%s302 + $0x8] sm:$0xff]
          %v373 = vcombine.high %v369, %v369
          %v375 = vunpack.c.l.s4 1983009808
          %v376 = vunpack.c.0.s8 %v375
          %v377 = vlaneseq
          %v378 = vshrl.u32 %v377, 7
          %v379 = vsub.s32 %v376, %v378
          %v380 = vrot.slane %v369, %v379
          %v382 = vunpack.c.l.s4 1983009808
          %v383 = vunpack.c.0.s8 %v382
          %v384 = vlaneseq
          %v385 = vshrl.u32 %v384, 7
          %v386 = vsub.s32 %v383, %v385
          %v387 = vrot.slane %v373, %v386
          %v388 = vcombine.high %v380, %v380
          %v389 = vcombine.high %v387, %v387
          %v390 = vcombine.high %v370, %v370
          %v392 = vunpack.c.l.s4 1983009808
          %v393 = vunpack.c.0.s8 %v392
          %v394 = vlaneseq
          %v395 = vshrl.u32 %v394, 7
          %v396 = vsub.s32 %v393, %v395
          %v397 = vrot.slane %v370, %v396
          %v399 = vunpack.c.l.s4 1983009808
          %v400 = vunpack.c.0.s8 %v399
          %v401 = vlaneseq
          %v402 = vshrl.u32 %v401, 7
          %v403 = vsub.s32 %v400, %v402
          %v404 = vrot.slane %v390, %v403
          %v405 = vcombine.high %v397, %v397
          %v406 = vcombine.high %v404, %v404
          %v415 = vpack.c.bf16 %v380, %v380
          %v416 = vpack.c.bf16 %v388, %v388
          %v417 = vpack.c.bf16 %v387, %v387
          %v418 = vpack.c.bf16 %v389, %v389
          %v419 = vpack.c.bf16 %v397, %v397
          %v420 = vpack.c.bf16 %v405, %v405
          %v421 = vpack.c.bf16 %v404, %v404
          %v422 = vpack.c.bf16 %v406, %v406
          %v423 = vld [vmem:[%s315] sm:$0xf]
          %v424 = vld [vmem:[%s315 + $0x4] sm:$0xf]
          %v425 = vld [vmem:[%s315 + $0x8] sm:$0xf]
          %v426 = vld [vmem:[%s315 + $0xc] sm:$0xf]
          %v427 = vld [vmem:[%s315 + $0x10] sm:$0xf]
          %v428 = vld [vmem:[%s315 + $0x14] sm:$0xf]
          %v429 = vld [vmem:[%s315 + $0x18] sm:$0xf]
          %v430 = vld [vmem:[%s315 + $0x1c] sm:$0xf]
          %v431 = vld [vmem:[%s315 + $0x20] sm:$0xf]
          %v432 = vld [vmem:[%s315 + $0x24] sm:$0xf]
          %v433 = vld [vmem:[%s315 + $0x28] sm:$0xf]
          %v434 = vld [vmem:[%s315 + $0x2c] sm:$0xf]
          %v435 = vld [vmem:[%s315 + $0x30] sm:$0xf]
          %v436 = vld [vmem:[%s315 + $0x34] sm:$0xf]
          %v437 = vld [vmem:[%s315 + $0x38] sm:$0xf]
          %v438 = vld [vmem:[%s315 + $0x3c] sm:$0xf]
          %v439 = vld [vmem:[%s315 + $0x40] sm:$0xf]
          %v440 = vld [vmem:[%s315 + $0x44] sm:$0xf]
          %v441 = vld [vmem:[%s315 + $0x48] sm:$0xf]
          %v442 = vld [vmem:[%s315 + $0x4c] sm:$0xf]
          %v443 = vld [vmem:[%s315 + $0x50] sm:$0xf]
          %v444 = vld [vmem:[%s315 + $0x54] sm:$0xf]
          %v445 = vld [vmem:[%s315 + $0x58] sm:$0xf]
          %v446 = vld [vmem:[%s315 + $0x5c] sm:$0xf]
          %v447 = vld [vmem:[%s315 + $0x60] sm:$0xf]
          %v448 = vld [vmem:[%s315 + $0x64] sm:$0xf]
          %v449 = vld [vmem:[%s315 + $0x68] sm:$0xf]
          %v450 = vld [vmem:[%s315 + $0x6c] sm:$0xf]
          %v451 = vld [vmem:[%s315 + $0x70] sm:$0xf]
          %v452 = vld [vmem:[%s315 + $0x74] sm:$0xf]
          %v453 = vld [vmem:[%s315 + $0x78] sm:$0xf]
          %v454 = vld [vmem:[%s315 + $0x7c] sm:$0xf]
          %v455 = vld [vmem:[%s315 + $0x80] sm:$0xf]
          %v456 = vld [vmem:[%s315 + $0x84] sm:$0xf]
          %v457 = vld [vmem:[%s315 + $0x88] sm:$0xf]
          %v458 = vld [vmem:[%s315 + $0x8c] sm:$0xf]
          %v459 = vld [vmem:[%s315 + $0x90] sm:$0xf]
          %v460 = vld [vmem:[%s315 + $0x94] sm:$0xf]
          %v461 = vld [vmem:[%s315 + $0x98] sm:$0xf]
          %v462 = vld [vmem:[%s315 + $0x9c] sm:$0xf]
          %v463 = vld [vmem:[%s315 + $0xa0] sm:$0xf]
          %v464 = vld [vmem:[%s315 + $0xa4] sm:$0xf]
          %v465 = vld [vmem:[%s315 + $0xa8] sm:$0xf]
          %v466 = vld [vmem:[%s315 + $0xac] sm:$0xf]
          %v467 = vld [vmem:[%s315 + $0xb0] sm:$0xf]
          %v468 = vld [vmem:[%s315 + $0xb4] sm:$0xf]
          %v469 = vld [vmem:[%s315 + $0xb8] sm:$0xf]
          %v470 = vld [vmem:[%s315 + $0xbc] sm:$0xf]
          %v471 = vld [vmem:[%s315 + $0xc0] sm:$0xf]
          %v472 = vld [vmem:[%s315 + $0xc4] sm:$0xf]
          %v473 = vld [vmem:[%s315 + $0xc8] sm:$0xf]
          %v474 = vld [vmem:[%s315 + $0xcc] sm:$0xf]
          %v475 = vld [vmem:[%s315 + $0xd0] sm:$0xf]
          %v476 = vld [vmem:[%s315 + $0xd4] sm:$0xf]
          %v477 = vld [vmem:[%s315 + $0xd8] sm:$0xf]
          %v478 = vld [vmem:[%s315 + $0xdc] sm:$0xf]
          %v479 = vld [vmem:[%s315 + $0xe0] sm:$0xf]
          %v480 = vld [vmem:[%s315 + $0xe4] sm:$0xf]
          %v481 = vld [vmem:[%s315 + $0xe8] sm:$0xf]
          %v482 = vld [vmem:[%s315 + $0xec] sm:$0xf]
          %v483 = vld [vmem:[%s315 + $0xf0] sm:$0xf]
          %v484 = vld [vmem:[%s315 + $0xf4] sm:$0xf]
          %v485 = vld [vmem:[%s315 + $0xf8] sm:$0xf]
          %v486 = vld [vmem:[%s315 + $0xfc] sm:$0xf]
          %v487 = vld [vmem:[%s315 + $0x100] sm:$0xf]
          %v488 = vld [vmem:[%s315 + $0x104] sm:$0xf]
          %v489 = vld [vmem:[%s315 + $0x108] sm:$0xf]
          %v490 = vld [vmem:[%s315 + $0x10c] sm:$0xf]
          %v491 = vld [vmem:[%s315 + $0x110] sm:$0xf]
          %v492 = vld [vmem:[%s315 + $0x114] sm:$0xf]
          %v493 = vld [vmem:[%s315 + $0x118] sm:$0xf]
          %v494 = vld [vmem:[%s315 + $0x11c] sm:$0xf]
          %v495 = vld [vmem:[%s315 + $0x120] sm:$0xf]
          %v496 = vld [vmem:[%s315 + $0x124] sm:$0xf]
          %v497 = vld [vmem:[%s315 + $0x128] sm:$0xf]
          %v498 = vld [vmem:[%s315 + $0x12c] sm:$0xf]
          %v499 = vld [vmem:[%s315 + $0x130] sm:$0xf]
          %v500 = vld [vmem:[%s315 + $0x134] sm:$0xf]
          %v501 = vld [vmem:[%s315 + $0x138] sm:$0xf]
          %v502 = vld [vmem:[%s315 + $0x13c] sm:$0xf]
          %v503 = vld [vmem:[%s315 + $0x140] sm:$0xf]
          %v504 = vld [vmem:[%s315 + $0x144] sm:$0xf]
          %v505 = vld [vmem:[%s315 + $0x148] sm:$0xf]
          %v506 = vld [vmem:[%s315 + $0x14c] sm:$0xf]
          %v507 = vld [vmem:[%s315 + $0x150] sm:$0xf]
          %v508 = vld [vmem:[%s315 + $0x154] sm:$0xf]
          %v509 = vld [vmem:[%s315 + $0x158] sm:$0xf]
          %v510 = vld [vmem:[%s315 + $0x15c] sm:$0xf]
          %v511 = vld [vmem:[%s315 + $0x160] sm:$0xf]
          %v512 = vld [vmem:[%s315 + $0x164] sm:$0xf]
          %v513 = vld [vmem:[%s315 + $0x168] sm:$0xf]
          %v514 = vld [vmem:[%s315 + $0x16c] sm:$0xf]
          %v515 = vld [vmem:[%s315 + $0x170] sm:$0xf]
          %v516 = vld [vmem:[%s315 + $0x174] sm:$0xf]
          %v517 = vld [vmem:[%s315 + $0x178] sm:$0xf]
          %v518 = vld [vmem:[%s315 + $0x17c] sm:$0xf]
          %v519 = vld [vmem:[%s315 + $0x180] sm:$0xf]
          %v520 = vld [vmem:[%s315 + $0x184] sm:$0xf]
          %v521 = vld [vmem:[%s315 + $0x188] sm:$0xf]
          %v522 = vld [vmem:[%s315 + $0x18c] sm:$0xf]
          %v523 = vld [vmem:[%s315 + $0x190] sm:$0xf]
          %v524 = vld [vmem:[%s315 + $0x194] sm:$0xf]
          %v525 = vld [vmem:[%s315 + $0x198] sm:$0xf]
          %v526 = vld [vmem:[%s315 + $0x19c] sm:$0xf]
          %v527 = vld [vmem:[%s315 + $0x1a0] sm:$0xf]
          %v528 = vld [vmem:[%s315 + $0x1a4] sm:$0xf]
          %v529 = vld [vmem:[%s315 + $0x1a8] sm:$0xf]
          %v530 = vld [vmem:[%s315 + $0x1ac] sm:$0xf]
          %v531 = vld [vmem:[%s315 + $0x1b0] sm:$0xf]
          %v532 = vld [vmem:[%s315 + $0x1b4] sm:$0xf]
          %v533 = vld [vmem:[%s315 + $0x1b8] sm:$0xf]
          %v534 = vld [vmem:[%s315 + $0x1bc] sm:$0xf]
          %v535 = vld [vmem:[%s315 + $0x1c0] sm:$0xf]
          %v536 = vld [vmem:[%s315 + $0x1c4] sm:$0xf]
          %v537 = vld [vmem:[%s315 + $0x1c8] sm:$0xf]
          %v538 = vld [vmem:[%s315 + $0x1cc] sm:$0xf]
          %v539 = vld [vmem:[%s315 + $0x1d0] sm:$0xf]
          %v540 = vld [vmem:[%s315 + $0x1d4] sm:$0xf]
          %v541 = vld [vmem:[%s315 + $0x1d8] sm:$0xf]
          %v542 = vld [vmem:[%s315 + $0x1dc] sm:$0xf]
          %v543 = vld [vmem:[%s315 + $0x1e0] sm:$0xf]
          %v544 = vld [vmem:[%s315 + $0x1e4] sm:$0xf]
          %v545 = vld [vmem:[%s315 + $0x1e8] sm:$0xf]
          %v546 = vld [vmem:[%s315 + $0x1ec] sm:$0xf]
          %v547 = vld [vmem:[%s315 + $0x1f0] sm:$0xf]
          %v548 = vld [vmem:[%s315 + $0x1f4] sm:$0xf]
          %v549 = vld [vmem:[%s315 + $0x1f8] sm:$0xf]
          %v550 = vld [vmem:[%s315 + $0x1fc] sm:$0xf]
          %v679 = vunpack.c.l.b16 %v423
          %v680 = vunpack.c.l.b16 %v424
          %v681 = vunpack.c.l.b16 %v425
          %v682 = vunpack.c.l.b16 %v426
          %v683 = vunpack.c.l.b16 %v427
          %v684 = vunpack.c.l.b16 %v428
          %v685 = vunpack.c.l.b16 %v429
          %v686 = vunpack.c.l.b16 %v430
          %v687 = vunpack.c.l.b16 %v431
          %v688 = vunpack.c.l.b16 %v432
          %v689 = vunpack.c.l.b16 %v433
          %v690 = vunpack.c.l.b16 %v434
          %v691 = vunpack.c.l.b16 %v435
          %v692 = vunpack.c.l.b16 %v436
          %v693 = vunpack.c.l.b16 %v437
          %v694 = vunpack.c.l.b16 %v438
          %v695 = vunpack.c.l.b16 %v439
          %v696 = vunpack.c.l.b16 %v440
          %v697 = vunpack.c.l.b16 %v441
          %v698 = vunpack.c.l.b16 %v442
          %v699 = vunpack.c.l.b16 %v443
          %v700 = vunpack.c.l.b16 %v444
          %v701 = vunpack.c.l.b16 %v445
          %v702 = vunpack.c.l.b16 %v446
          %v703 = vunpack.c.l.b16 %v447
          %v704 = vunpack.c.l.b16 %v448
          %v705 = vunpack.c.l.b16 %v449
          %v706 = vunpack.c.l.b16 %v450
          %v707 = vunpack.c.l.b16 %v451
          %v708 = vunpack.c.l.b16 %v452
          %v709 = vunpack.c.l.b16 %v453
          %v710 = vunpack.c.l.b16 %v454
          %v711 = vunpack.c.l.b16 %v455
          %v712 = vunpack.c.l.b16 %v456
          %v713 = vunpack.c.l.b16 %v457
          %v714 = vunpack.c.l.b16 %v458
          %v715 = vunpack.c.l.b16 %v459
          %v716 = vunpack.c.l.b16 %v460
          %v717 = vunpack.c.l.b16 %v461
          %v718 = vunpack.c.l.b16 %v462
          %v719 = vunpack.c.l.b16 %v463
          %v720 = vunpack.c.l.b16 %v464
          %v721 = vunpack.c.l.b16 %v465
          %v722 = vunpack.c.l.b16 %v466
          %v723 = vunpack.c.l.b16 %v467
          %v724 = vunpack.c.l.b16 %v468
          %v725 = vunpack.c.l.b16 %v469
          %v726 = vunpack.c.l.b16 %v470
          %v727 = vunpack.c.l.b16 %v471
          %v728 = vunpack.c.l.b16 %v472
          %v729 = vunpack.c.l.b16 %v473
          %v730 = vunpack.c.l.b16 %v474
          %v731 = vunpack.c.l.b16 %v475
          %v732 = vunpack.c.l.b16 %v476
          %v733 = vunpack.c.l.b16 %v477
          %v734 = vunpack.c.l.b16 %v478
          %v735 = vunpack.c.l.b16 %v479
          %v736 = vunpack.c.l.b16 %v480
          %v737 = vunpack.c.l.b16 %v481
          %v738 = vunpack.c.l.b16 %v482
          %v739 = vunpack.c.l.b16 %v483
          %v740 = vunpack.c.l.b16 %v484
          %v741 = vunpack.c.l.b16 %v485
          %v742 = vunpack.c.l.b16 %v486
          %v743 = vunpack.c.l.b16 %v487
          %v744 = vunpack.c.l.b16 %v488
          %v745 = vunpack.c.l.b16 %v489
          %v746 = vunpack.c.l.b16 %v490
          %v747 = vunpack.c.l.b16 %v491
          %v748 = vunpack.c.l.b16 %v492
          %v749 = vunpack.c.l.b16 %v493
          %v750 = vunpack.c.l.b16 %v494
          %v751 = vunpack.c.l.b16 %v495
          %v752 = vunpack.c.l.b16 %v496
          %v753 = vunpack.c.l.b16 %v497
          %v754 = vunpack.c.l.b16 %v498
          %v755 = vunpack.c.l.b16 %v499
          %v756 = vunpack.c.l.b16 %v500
          %v757 = vunpack.c.l.b16 %v501
          %v758 = vunpack.c.l.b16 %v502
          %v759 = vunpack.c.l.b16 %v503
          %v760 = vunpack.c.l.b16 %v504
          %v761 = vunpack.c.l.b16 %v505
          %v762 = vunpack.c.l.b16 %v506
          %v763 = vunpack.c.l.b16 %v507
          %v764 = vunpack.c.l.b16 %v508
          %v765 = vunpack.c.l.b16 %v509
          %v766 = vunpack.c.l.b16 %v510
          %v767 = vunpack.c.l.b16 %v511
          %v768 = vunpack.c.l.b16 %v512
          %v769 = vunpack.c.l.b16 %v513
          %v770 = vunpack.c.l.b16 %v514
          %v771 = vunpack.c.l.b16 %v515
          %v772 = vunpack.c.l.b16 %v516
          %v773 = vunpack.c.l.b16 %v517
          %v774 = vunpack.c.l.b16 %v518
          %v775 = vunpack.c.l.b16 %v519
          %v776 = vunpack.c.l.b16 %v520
          %v777 = vunpack.c.l.b16 %v521
          %v778 = vunpack.c.l.b16 %v522
          %v779 = vunpack.c.l.b16 %v523
          %v780 = vunpack.c.l.b16 %v524
          %v781 = vunpack.c.l.b16 %v525
          %v782 = vunpack.c.l.b16 %v526
          %v783 = vunpack.c.l.b16 %v527
          %v784 = vunpack.c.l.b16 %v528
          %v785 = vunpack.c.l.b16 %v529
          %v786 = vunpack.c.l.b16 %v530
          %v787 = vunpack.c.l.b16 %v531
          %v788 = vunpack.c.l.b16 %v532
          %v789 = vunpack.c.l.b16 %v533
          %v790 = vunpack.c.l.b16 %v534
          %v791 = vunpack.c.l.b16 %v535
          %v792 = vunpack.c.l.b16 %v536
          %v793 = vunpack.c.l.b16 %v537
          %v794 = vunpack.c.l.b16 %v538
          %v795 = vunpack.c.l.b16 %v539
          %v796 = vunpack.c.l.b16 %v540
          %v797 = vunpack.c.l.b16 %v541
          %v798 = vunpack.c.l.b16 %v542
          %v799 = vunpack.c.l.b16 %v543
          %v800 = vunpack.c.l.b16 %v544
          %v801 = vunpack.c.l.b16 %v545
          %v802 = vunpack.c.l.b16 %v546
          %v803 = vunpack.c.l.b16 %v547
          %v804 = vunpack.c.l.b16 %v548
          %v805 = vunpack.c.l.b16 %v549
          %v806 = vunpack.c.l.b16 %v550
          %v807 = vpack.c.b16 %v680, %v679
          %v808 = vpack.c.b16 %v682, %v681
          %v809 = vpack.c.b16 %v684, %v683
          %v810 = vpack.c.b16 %v686, %v685
          %v811 = vpack.c.b16 %v688, %v687
          %v812 = vpack.c.b16 %v690, %v689
          %v813 = vpack.c.b16 %v692, %v691
          %v814 = vpack.c.b16 %v694, %v693
          %v815 = vpack.c.b16 %v696, %v695
          %v816 = vpack.c.b16 %v698, %v697
          %v817 = vpack.c.b16 %v700, %v699
          %v818 = vpack.c.b16 %v702, %v701
          %v819 = vpack.c.b16 %v704, %v703
          %v820 = vpack.c.b16 %v706, %v705
          %v821 = vpack.c.b16 %v708, %v707
          %v822 = vpack.c.b16 %v710, %v709
          %v823 = vpack.c.b16 %v712, %v711
          %v824 = vpack.c.b16 %v714, %v713
          %v825 = vpack.c.b16 %v716, %v715
          %v826 = vpack.c.b16 %v718, %v717
          %v827 = vpack.c.b16 %v720, %v719
          %v828 = vpack.c.b16 %v722, %v721
          %v829 = vpack.c.b16 %v724, %v723
          %v830 = vpack.c.b16 %v726, %v725
          %v831 = vpack.c.b16 %v728, %v727
          %v832 = vpack.c.b16 %v730, %v729
          %v833 = vpack.c.b16 %v732, %v731
          %v834 = vpack.c.b16 %v734, %v733
          %v835 = vpack.c.b16 %v736, %v735
          %v836 = vpack.c.b16 %v738, %v737
          %v837 = vpack.c.b16 %v740, %v739
          %v838 = vpack.c.b16 %v742, %v741
          %v839 = vpack.c.b16 %v744, %v743
          %v840 = vpack.c.b16 %v746, %v745
          %v841 = vpack.c.b16 %v748, %v747
          %v842 = vpack.c.b16 %v750, %v749
          %v843 = vpack.c.b16 %v752, %v751
          %v844 = vpack.c.b16 %v754, %v753
          %v845 = vpack.c.b16 %v756, %v755
          %v846 = vpack.c.b16 %v758, %v757
          %v847 = vpack.c.b16 %v760, %v759
          %v848 = vpack.c.b16 %v762, %v761
          %v849 = vpack.c.b16 %v764, %v763
          %v850 = vpack.c.b16 %v766, %v765
          %v851 = vpack.c.b16 %v768, %v767
          %v852 = vpack.c.b16 %v770, %v769
          %v853 = vpack.c.b16 %v772, %v771
          %v854 = vpack.c.b16 %v774, %v773
          %v855 = vpack.c.b16 %v776, %v775
          %v856 = vpack.c.b16 %v778, %v777
          %v857 = vpack.c.b16 %v780, %v779
          %v858 = vpack.c.b16 %v782, %v781
          %v859 = vpack.c.b16 %v784, %v783
          %v860 = vpack.c.b16 %v786, %v785
          %v861 = vpack.c.b16 %v788, %v787
          %v862 = vpack.c.b16 %v790, %v789
          %v863 = vpack.c.b16 %v792, %v791
          %v864 = vpack.c.b16 %v794, %v793
          %v865 = vpack.c.b16 %v796, %v795
          %v866 = vpack.c.b16 %v798, %v797
          %v867 = vpack.c.b16 %v800, %v799
          %v868 = vpack.c.b16 %v802, %v801
          %v869 = vpack.c.b16 %v804, %v803
          %v870 = vpack.c.b16 %v806, %v805
          %935 = vmatprep.subr.bf16.mxu0 0
          %936 = vmatpush1.bf16.msra.mxu0 %v814
          %937 = vmatprep.subr.bf16.mxu0 0
          %938 = vmatpush1.bf16.msra.mxu0 %v813
          %939 = vmatprep.subr.bf16.mxu0 0
          %940 = vmatpush1.bf16.msra.mxu0 %v812
          %941 = vmatprep.subr.bf16.mxu0 0
          %942 = vmatpush1.bf16.msra.mxu0 %v811
          %943 = vmatprep.subr.bf16.mxu0 0
          %944 = vmatpush1.bf16.msra.mxu0 %v810
          %945 = vmatprep.subr.bf16.mxu0 0
          %946 = vmatpush1.bf16.msra.mxu0 %v809
          %947 = vmatprep.subr.bf16.mxu0 0
          %948 = vmatpush1.bf16.msra.mxu0 %v808
          %949 = vmatprep.subr.bf16.mxu0 0
          %950 = vmatpush1.bf16.msra.mxu0 %v807
          %951 = vmatprep.subr.bf16.mxu0 0
          %952 = vmatpush2.bf16.msra.mxu0 %v822
          %953 = vmatprep.subr.bf16.mxu0 0
          %954 = vmatpush2.bf16.msra.mxu0 %v821
          %955 = vmatprep.subr.bf16.mxu0 0
          %956 = vmatpush2.bf16.msra.mxu0 %v820
          %957 = vmatprep.subr.bf16.mxu0 0
          %958 = vmatpush2.bf16.msra.mxu0 %v819
          %959 = vmatprep.subr.bf16.mxu0 0
          %960 = vmatpush2.bf16.msra.mxu0 %v818
          %961 = vmatprep.subr.bf16.mxu0 0
          %962 = vmatpush2.bf16.msra.mxu0 %v817
          %963 = vmatprep.subr.bf16.mxu0 0
          %964 = vmatpush2.bf16.msra.mxu0 %v816
          %965 = vmatprep.subr.bf16.mxu0 0
          %966 = vmatpush2.bf16.msra.mxu0 %v815
          %967 = vmatprep.mubr.bf16.mxu0 %v416
          %968 = vmatmul.mubr.bf16.gmra.mxu0 %v415
          %v969 = vpop.f32.mrf.mxu0
          %v970 = vadd.f32 0.0, %v969
          %v971 = vpop.f32.mrf.mxu0
          %v972 = vpop.f32.mrf.mxu0
          %v973 = vpop.f32.mrf.mxu0
          %974 = vdwg.mxu0
          %975 = vmatprep.subr.bf16.mxu0 0
          %976 = vmatpush1.bf16.msra.mxu0 %v830
          %977 = vmatprep.subr.bf16.mxu0 0
          %978 = vmatpush1.bf16.msra.mxu0 %v829
          %979 = vmatprep.subr.bf16.mxu0 0
          %980 = vmatpush1.bf16.msra.mxu0 %v828
          %981 = vmatprep.subr.bf16.mxu0 0
          %982 = vmatpush1.bf16.msra.mxu0 %v827
          %983 = vmatprep.subr.bf16.mxu0 0
          %984 = vmatpush1.bf16.msra.mxu0 %v826
          %985 = vmatprep.subr.bf16.mxu0 0
          %986 = vmatpush1.bf16.msra.mxu0 %v825
          %987 = vmatprep.subr.bf16.mxu0 0
          %988 = vmatpush1.bf16.msra.mxu0 %v824
          %989 = vmatprep.subr.bf16.mxu0 0
          %990 = vmatpush1.bf16.msra.mxu0 %v823
          %991 = vmatprep.subr.bf16.mxu0 0
          %992 = vmatpush2.bf16.msra.mxu0 %v838
          %993 = vmatprep.subr.bf16.mxu0 0
          %994 = vmatpush2.bf16.msra.mxu0 %v837
          %995 = vmatprep.subr.bf16.mxu0 0
          %996 = vmatpush2.bf16.msra.mxu0 %v836
          %997 = vmatprep.subr.bf16.mxu0 0
          %998 = vmatpush2.bf16.msra.mxu0 %v835
          %999 = vmatprep.subr.bf16.mxu0 0
          %1000 = vmatpush2.bf16.msra.mxu0 %v834
          %1001 = vmatprep.subr.bf16.mxu0 0
          %1002 = vmatpush2.bf16.msra.mxu0 %v833
          %1003 = vmatprep.subr.bf16.mxu0 0
          %1004 = vmatpush2.bf16.msra.mxu0 %v832
          %1005 = vmatprep.subr.bf16.mxu0 0
          %1006 = vmatpush2.bf16.msra.mxu0 %v831
          %1007 = vmatprep.mubr.bf16.mxu0 %v418
          %1008 = vmatmul.mubr.bf16.gmra.mxu0 %v417
          %v1009 = vpop.f32.mrf.mxu0
          %v1010 = vadd.f32 %v970, %v1009
          %v1011 = vpop.f32.mrf.mxu0
          %v1012 = vpop.f32.mrf.mxu0
          %v1013 = vpop.f32.mrf.mxu0
          %1014 = vdwg.mxu0
          %1015 = vmatprep.subr.bf16.mxu0 0
          %1016 = vmatpush1.bf16.msra.mxu0 %v846
          %1017 = vmatprep.subr.bf16.mxu0 0
          %1018 = vmatpush1.bf16.msra.mxu0 %v845
          %1019 = vmatprep.subr.bf16.mxu0 0
          %1020 = vmatpush1.bf16.msra.mxu0 %v844
          %1021 = vmatprep.subr.bf16.mxu0 0
          %1022 = vmatpush1.bf16.msra.mxu0 %v843
          %1023 = vmatprep.subr.bf16.mxu0 0
          %1024 = vmatpush1.bf16.msra.mxu0 %v842
          %1025 = vmatprep.subr.bf16.mxu0 0
          %1026 = vmatpush1.bf16.msra.mxu0 %v841
          %1027 = vmatprep.subr.bf16.mxu0 0
          %1028 = vmatpush1.bf16.msra.mxu0 %v840
          %1029 = vmatprep.subr.bf16.mxu0 0
          %1030 = vmatpush1.bf16.msra.mxu0 %v839
          %1031 = vmatprep.subr.bf16.mxu0 0
          %1032 = vmatpush2.bf16.msra.mxu0 %v854
          %1033 = vmatprep.subr.bf16.mxu0 0
          %1034 = vmatpush2.bf16.msra.mxu0 %v853
          %1035 = vmatprep.subr.bf16.mxu0 0
          %1036 = vmatpush2.bf16.msra.mxu0 %v852
          %1037 = vmatprep.subr.bf16.mxu0 0
          %1038 = vmatpush2.bf16.msra.mxu0 %v851
          %1039 = vmatprep.subr.bf16.mxu0 0
          %1040 = vmatpush2.bf16.msra.mxu0 %v850
          %1041 = vmatprep.subr.bf16.mxu0 0
          %1042 = vmatpush2.bf16.msra.mxu0 %v849
          %1043 = vmatprep.subr.bf16.mxu0 0
          %1044 = vmatpush2.bf16.msra.mxu0 %v848
          %1045 = vmatprep.subr.bf16.mxu0 0
          %1046 = vmatpush2.bf16.msra.mxu0 %v847
          %1047 = vmatprep.mubr.bf16.mxu0 %v420
          %1048 = vmatmul.mubr.bf16.gmra.mxu0 %v419
          %v1049 = vpop.f32.mrf.mxu0
          %v1050 = vadd.f32 %v1010, %v1049
          %v1051 = vpop.f32.mrf.mxu0
          %v1052 = vpop.f32.mrf.mxu0
          %v1053 = vpop.f32.mrf.mxu0
          %1054 = vdwg.mxu0
          %1055 = vmatprep.subr.bf16.mxu0 0
          %1056 = vmatpush1.bf16.msra.mxu0 %v862
          %1057 = vmatprep.subr.bf16.mxu0 0
          %1058 = vmatpush1.bf16.msra.mxu0 %v861
          %1059 = vmatprep.subr.bf16.mxu0 0
          %1060 = vmatpush1.bf16.msra.mxu0 %v860
          %1061 = vmatprep.subr.bf16.mxu0 0
          %1062 = vmatpush1.bf16.msra.mxu0 %v859
          %1063 = vmatprep.subr.bf16.mxu0 0
          %1064 = vmatpush1.bf16.msra.mxu0 %v858
          %1065 = vmatprep.subr.bf16.mxu0 0
          %1066 = vmatpush1.bf16.msra.mxu0 %v857
          %1067 = vmatprep.subr.bf16.mxu0 0
          %1068 = vmatpush1.bf16.msra.mxu0 %v856
          %1069 = vmatprep.subr.bf16.mxu0 0
          %1070 = vmatpush1.bf16.msra.mxu0 %v855
          %1071 = vmatprep.subr.bf16.mxu0 0
          %1072 = vmatpush2.bf16.msra.mxu0 %v870
          %1073 = vmatprep.subr.bf16.mxu0 0
          %1074 = vmatpush2.bf16.msra.mxu0 %v869
          %1075 = vmatprep.subr.bf16.mxu0 0
          %1076 = vmatpush2.bf16.msra.mxu0 %v868
          %1077 = vmatprep.subr.bf16.mxu0 0
          %1078 = vmatpush2.bf16.msra.mxu0 %v867
          %1079 = vmatprep.subr.bf16.mxu0 0
          %1080 = vmatpush2.bf16.msra.mxu0 %v866
          %1081 = vmatprep.subr.bf16.mxu0 0
          %1082 = vmatpush2.bf16.msra.mxu0 %v865
          %1083 = vmatprep.subr.bf16.mxu0 0
          %1084 = vmatpush2.bf16.msra.mxu0 %v864
          %1085 = vmatprep.subr.bf16.mxu0 0
          %1086 = vmatpush2.bf16.msra.mxu0 %v863
          %1087 = vmatprep.mubr.bf16.mxu0 %v422
          %1088 = vmatmul.mubr.bf16.gmra.mxu0 %v421
          %v1089 = vpop.f32.mrf.mxu0
          %v1090 = vadd.f32 %v1050, %v1089
          %v1091 = vpop.f32.mrf.mxu0
          %v1092 = vpop.f32.mrf.mxu0
          %v1093 = vpop.f32.mrf.mxu0
          %1094 = vdwg.mxu0
          %v1095 = vadd.f32 %v368, %v1090
          %1096 = vst [vmem:[#allocation2] sm:$0x3] %v1095
        $region68: #{tpu_custom_call.1} parent=39 // pred_fallthru
          _
        %p1097 = scmp.eq.s32.totalorder %s30, 1
        %p1098 = pnand %p357, %p1097
        %p1099 = pneg %p1098
        // Predicated region
        $region69: #{tpu_custom_call.1} parent=39 // pred_check
          _
        $region70: #{tpu_custom_call.1} parent=39 // pred_check_branch
          %1101 = sbr.rel (%p1098) target = $region72
        $region71: #{tpu_custom_call.1} parent=39 // pred_region
          %v1102 = vld [vmem:[#allocation2] sm:$0x3]
          %v1103 = vmax.f32 %v1102, 0.0
          %v1104 = vld [vmem:[#allocation6] sm:$0x3]
          %v1105 = vpack.c.bf16 %v1104, %v1104
          %v1106 = vld [vmem:[#allocation9] sm:$0xf]
          %v1107 = vld [vmem:[#allocation9 + $0x4] sm:$0xf]
          %v1108 = vld [vmem:[#allocation9 + $0x8] sm:$0xf]
          %v1109 = vld [vmem:[#allocation9 + $0xc] sm:$0xf]
          %v1114 = vunpack.c.l.b16 %v1106
          %v1115 = vunpack.c.l.b16 %v1107
          %v1116 = vunpack.c.l.b16 %v1108
          %v1117 = vunpack.c.l.b16 %v1109
          %v1118 = vpack.c.b16 %v1115, %v1114
          %v1119 = vpack.c.b16 %v1117, %v1116
          %vm1122 = vcmask 261120
          %v1124 = vsel %vm1122, %v1105, 0
          %1126 = vmatprep.subr.bf16.mxu0 0
          %1127 = vmatpush1.bf16.msra.mxu0 0
          %1128 = vmatprep.subr.bf16.mxu0 0
          %1129 = vmatpush1.bf16.msra.mxu0 0
          %1130 = vmatprep.subr.bf16.mxu0 0
          %1131 = vmatpush1.bf16.msra.mxu0 0
          %1132 = vmatprep.subr.bf16.mxu0 0
          %1133 = vmatpush1.bf16.msra.mxu0 0
          %1134 = vmatprep.subr.bf16.mxu0 0
          %1135 = vmatpush1.bf16.msra.mxu0 0
          %1136 = vmatprep.subr.bf16.mxu0 0
          %1137 = vmatpush1.bf16.msra.mxu0 0
          %1138 = vmatprep.subr.bf16.mxu0 0
          %1139 = vmatpush1.bf16.msra.mxu0 %v1119
          %1140 = vmatprep.subr.bf16.mxu0 0
          %1141 = vmatpush1.bf16.msra.mxu0 %v1118
          %1142 = vmatprep.subr.bf16.mxu0 0
          %1143 = vmatpush2.bf16.msra.mxu0 0
          %1144 = vmatprep.subr.bf16.mxu0 0
          %1145 = vmatpush2.bf16.msra.mxu0 0
          %1146 = vmatprep.subr.bf16.mxu0 0
          %1147 = vmatpush2.bf16.msra.mxu0 0
          %1148 = vmatprep.subr.bf16.mxu0 0
          %1149 = vmatpush2.bf16.msra.mxu0 0
          %1150 = vmatprep.subr.bf16.mxu0 0
          %1151 = vmatpush2.bf16.msra.mxu0 0
          %1152 = vmatprep.subr.bf16.mxu0 0
          %1153 = vmatpush2.bf16.msra.mxu0 0
          %1154 = vmatprep.subr.bf16.mxu0 0
          %1155 = vmatpush2.bf16.msra.mxu0 0
          %1156 = vmatprep.subr.bf16.mxu0 0
          %1157 = vmatpush2.bf16.msra.mxu0 0
          %1158 = vmatprep.mubr.bf16.mxu0 0
          %1159 = vmatmul.mubr.bf16.gmra.mxu0 %v1124
          %v1160 = vpop.f32.mrf.mxu0
          %v1161 = vadd.f32 0.0, %v1160
          %v1162 = vpop.f32.mrf.mxu0
          %v1163 = vpop.f32.mrf.mxu0
          %v1164 = vpop.f32.mrf.mxu0
          %1165 = vdwg.mxu0
          %v1166 = vmax.f32 %v1161, 0.0
          %v1167 = vmul.f32 %v1103, %v1166
          %1168 = vst [vmem:[#allocation2] sm:$0x3] %v1167
          %v1169 = vpack.c.bf16 %v1167, %v1167
          %v1170 = vld [vmem:[#allocation10] sm:$0xf]
          %v1171 = vld [vmem:[#allocation10 + $0x4] sm:$0xf]
          %v1172 = vld [vmem:[#allocation10 + $0x8] sm:$0xf]
          %v1173 = vld [vmem:[#allocation10 + $0xc] sm:$0xf]
          %v1174 = vld [vmem:[#allocation10 + $0x10] sm:$0xf]
          %v1175 = vld [vmem:[#allocation10 + $0x14] sm:$0xf]
          %v1176 = vld [vmem:[#allocation10 + $0x18] sm:$0xf]
          %v1177 = vld [vmem:[#allocation10 + $0x1c] sm:$0xf]
          %v1178 = vld [vmem:[#allocation10 + $0x20] sm:$0xf]
          %v1179 = vld [vmem:[#allocation10 + $0x24] sm:$0xf]
          %v1180 = vld [vmem:[#allocation10 + $0x28] sm:$0xf]
          %v1181 = vld [vmem:[#allocation10 + $0x2c] sm:$0xf]
          %v1182 = vld [vmem:[#allocation10 + $0x30] sm:$0xf]
          %v1183 = vld [vmem:[#allocation10 + $0x34] sm:$0xf]
          %v1184 = vld [vmem:[#allocation10 + $0x38] sm:$0xf]
          %v1185 = vld [vmem:[#allocation10 + $0x3c] sm:$0xf]
          %v1202 = vunpack.c.l.b16 %v1170
          %v1203 = vunpack.c.l.b16 %v1171
          %v1204 = vunpack.c.l.b16 %v1172
          %v1205 = vunpack.c.l.b16 %v1173
          %v1206 = vunpack.c.l.b16 %v1174
          %v1207 = vunpack.c.l.b16 %v1175
          %v1208 = vunpack.c.l.b16 %v1176
          %v1209 = vunpack.c.l.b16 %v1177
          %v1210 = vunpack.c.l.b16 %v1178
          %v1211 = vunpack.c.l.b16 %v1179
          %v1212 = vunpack.c.l.b16 %v1180
          %v1213 = vunpack.c.l.b16 %v1181
          %v1214 = vunpack.c.l.b16 %v1182
          %v1215 = vunpack.c.l.b16 %v1183
          %v1216 = vunpack.c.l.b16 %v1184
          %v1217 = vunpack.c.l.b16 %v1185
          %v1218 = vpack.c.b16 %v1203, %v1202
          %v1219 = vpack.c.b16 %v1205, %v1204
          %v1220 = vpack.c.b16 %v1207, %v1206
          %v1221 = vpack.c.b16 %v1209, %v1208
          %v1222 = vpack.c.b16 %v1211, %v1210
          %v1223 = vpack.c.b16 %v1213, %v1212
          %v1224 = vpack.c.b16 %v1215, %v1214
          %v1225 = vpack.c.b16 %v1217, %v1216
          %1234 = vmatprep.subr.bf16.mxu0 0
          %1235 = vmatpush1.bf16.msra.mxu0 %v1225
          %1236 = vmatprep.subr.bf16.mxu0 0
          %1237 = vmatpush1.bf16.msra.mxu0 %v1224
          %1238 = vmatprep.subr.bf16.mxu0 0
          %1239 = vmatpush1.bf16.msra.mxu0 %v1223
          %1240 = vmatprep.subr.bf16.mxu0 0
          %1241 = vmatpush1.bf16.msra.mxu0 %v1222
          %1242 = vmatprep.subr.bf16.mxu0 0
          %1243 = vmatpush1.bf16.msra.mxu0 %v1221
          %1244 = vmatprep.subr.bf16.mxu0 0
          %1245 = vmatpush1.bf16.msra.mxu0 %v1220
          %1246 = vmatprep.subr.bf16.mxu0 0
          %1247 = vmatpush1.bf16.msra.mxu0 %v1219
          %1248 = vmatprep.subr.bf16.mxu0 0
          %1249 = vmatpush1.bf16.msra.mxu0 %v1218
          %1250 = vmatprep.subr.bf16.mxu0 0
          %1251 = vmatpush2.bf16.msra.mxu0 0
          %1252 = vmatprep.subr.bf16.mxu0 0
          %1253 = vmatpush2.bf16.msra.mxu0 0
          %1254 = vmatprep.subr.bf16.mxu0 0
          %1255 = vmatpush2.bf16.msra.mxu0 0
          %1256 = vmatprep.subr.bf16.mxu0 0
          %1257 = vmatpush2.bf16.msra.mxu0 0
          %1258 = vmatprep.subr.bf16.mxu0 0
          %1259 = vmatpush2.bf16.msra.mxu0 0
          %1260 = vmatprep.subr.bf16.mxu0 0
          %1261 = vmatpush2.bf16.msra.mxu0 0
          %1262 = vmatprep.subr.bf16.mxu0 0
          %1263 = vmatpush2.bf16.msra.mxu0 0
          %1264 = vmatprep.subr.bf16.mxu0 0
          %1265 = vmatpush2.bf16.msra.mxu0 0
          %1266 = vmatprep.mubr.bf16.mxu0 0
          %1267 = vmatmul.mubr.bf16.gmra.mxu0 %v1169
          %v1268 = vpop.f32.mrf.mxu0
          %v1269 = vadd.f32 0.0, %v1268
          %v1270 = vpop.f32.mrf.mxu0
          %v1271 = vpop.f32.mrf.mxu0
          %v1272 = vpop.f32.mrf.mxu0
          %1273 = vdwg.mxu0
          %1274 = vst [vmem:[#allocation12] sm:$0x3] %v1269
        $region72: #{tpu_custom_call.1} parent=39 // pred_fallthru
          _
        %p1275 = scmp.eq.s32.totalorder %s29, 1
        // Predicated region
        $region73: #{tpu_custom_call.1} parent=39 // pred_check
          %p1276 = pneg %p1275
        $region74: #{tpu_custom_call.1} parent=39 // pred_check_branch
          %1278 = sbr.rel (%p1276) target = $region76
        $region75: #{tpu_custom_call.1} parent=39 // pred_region
          %v1279 = vld [vmem:[#allocation2] sm:$0x3]
          %v1280 = vpack.c.bf16 %v1279, %v1279
          %v1281 = vld [vmem:[%s315] sm:$0xf]
          %v1282 = vld [vmem:[%s315 + $0x4] sm:$0xf]
          %v1283 = vld [vmem:[%s315 + $0x8] sm:$0xf]
          %v1284 = vld [vmem:[%s315 + $0xc] sm:$0xf]
          %v1285 = vld [vmem:[%s315 + $0x10] sm:$0xf]
          %v1286 = vld [vmem:[%s315 + $0x14] sm:$0xf]
          %v1287 = vld [vmem:[%s315 + $0x18] sm:$0xf]
          %v1288 = vld [vmem:[%s315 + $0x1c] sm:$0xf]
          %v1289 = vld [vmem:[%s315 + $0x20] sm:$0xf]
          %v1290 = vld [vmem:[%s315 + $0x24] sm:$0xf]
          %v1291 = vld [vmem:[%s315 + $0x28] sm:$0xf]
          %v1292 = vld [vmem:[%s315 + $0x2c] sm:$0xf]
          %v1293 = vld [vmem:[%s315 + $0x30] sm:$0xf]
          %v1294 = vld [vmem:[%s315 + $0x34] sm:$0xf]
          %v1295 = vld [vmem:[%s315 + $0x38] sm:$0xf]
          %v1296 = vld [vmem:[%s315 + $0x3c] sm:$0xf]
          %v1297 = vld [vmem:[%s315 + $0x40] sm:$0xf]
          %v1298 = vld [vmem:[%s315 + $0x44] sm:$0xf]
          %v1299 = vld [vmem:[%s315 + $0x48] sm:$0xf]
          %v1300 = vld [vmem:[%s315 + $0x4c] sm:$0xf]
          %v1301 = vld [vmem:[%s315 + $0x50] sm:$0xf]
          %v1302 = vld [vmem:[%s315 + $0x54] sm:$0xf]
          %v1303 = vld [vmem:[%s315 + $0x58] sm:$0xf]
          %v1304 = vld [vmem:[%s315 + $0x5c] sm:$0xf]
          %v1305 = vld [vmem:[%s315 + $0x60] sm:$0xf]
          %v1306 = vld [vmem:[%s315 + $0x64] sm:$0xf]
          %v1307 = vld [vmem:[%s315 + $0x68] sm:$0xf]
          %v1308 = vld [vmem:[%s315 + $0x6c] sm:$0xf]
          %v1309 = vld [vmem:[%s315 + $0x70] sm:$0xf]
          %v1310 = vld [vmem:[%s315 + $0x74] sm:$0xf]
          %v1311 = vld [vmem:[%s315 + $0x78] sm:$0xf]
          %v1312 = vld [vmem:[%s315 + $0x7c] sm:$0xf]
          %v1313 = vld [vmem:[%s315 + $0x80] sm:$0xf]
          %v1314 = vld [vmem:[%s315 + $0x84] sm:$0xf]
          %v1315 = vld [vmem:[%s315 + $0x88] sm:$0xf]
          %v1316 = vld [vmem:[%s315 + $0x8c] sm:$0xf]
          %v1317 = vld [vmem:[%s315 + $0x90] sm:$0xf]
          %v1318 = vld [vmem:[%s315 + $0x94] sm:$0xf]
          %v1319 = vld [vmem:[%s315 + $0x98] sm:$0xf]
          %v1320 = vld [vmem:[%s315 + $0x9c] sm:$0xf]
          %v1321 = vld [vmem:[%s315 + $0xa0] sm:$0xf]
          %v1322 = vld [vmem:[%s315 + $0xa4] sm:$0xf]
          %v1323 = vld [vmem:[%s315 + $0xa8] sm:$0xf]
          %v1324 = vld [vmem:[%s315 + $0xac] sm:$0xf]
          %v1325 = vld [vmem:[%s315 + $0xb0] sm:$0xf]
          %v1326 = vld [vmem:[%s315 + $0xb4] sm:$0xf]
          %v1327 = vld [vmem:[%s315 + $0xb8] sm:$0xf]
          %v1328 = vld [vmem:[%s315 + $0xbc] sm:$0xf]
          %v1329 = vld [vmem:[%s315 + $0xc0] sm:$0xf]
          %v1330 = vld [vmem:[%s315 + $0xc4] sm:$0xf]
          %v1331 = vld [vmem:[%s315 + $0xc8] sm:$0xf]
          %v1332 = vld [vmem:[%s315 + $0xcc] sm:$0xf]
          %v1333 = vld [vmem:[%s315 + $0xd0] sm:$0xf]
          %v1334 = vld [vmem:[%s315 + $0xd4] sm:$0xf]
          %v1335 = vld [vmem:[%s315 + $0xd8] sm:$0xf]
          %v1336 = vld [vmem:[%s315 + $0xdc] sm:$0xf]
          %v1337 = vld [vmem:[%s315 + $0xe0] sm:$0xf]
          %v1338 = vld [vmem:[%s315 + $0xe4] sm:$0xf]
          %v1339 = vld [vmem:[%s315 + $0xe8] sm:$0xf]
          %v1340 = vld [vmem:[%s315 + $0xec] sm:$0xf]
          %v1341 = vld [vmem:[%s315 + $0xf0] sm:$0xf]
          %v1342 = vld [vmem:[%s315 + $0xf4] sm:$0xf]
          %v1343 = vld [vmem:[%s315 + $0xf8] sm:$0xf]
          %v1344 = vld [vmem:[%s315 + $0xfc] sm:$0xf]
          %v1409 = vunpack.c.l.b16 %v1281
          %v1410 = vunpack.c.l.b16 %v1282
          %v1411 = vunpack.c.l.b16 %v1283
          %v1412 = vunpack.c.l.b16 %v1284
          %v1413 = vunpack.c.l.b16 %v1285
          %v1414 = vunpack.c.l.b16 %v1286
          %v1415 = vunpack.c.l.b16 %v1287
          %v1416 = vunpack.c.l.b16 %v1288
          %v1417 = vunpack.c.l.b16 %v1289
          %v1418 = vunpack.c.l.b16 %v1290
          %v1419 = vunpack.c.l.b16 %v1291
          %v1420 = vunpack.c.l.b16 %v1292
          %v1421 = vunpack.c.l.b16 %v1293
          %v1422 = vunpack.c.l.b16 %v1294
          %v1423 = vunpack.c.l.b16 %v1295
          %v1424 = vunpack.c.l.b16 %v1296
          %v1425 = vunpack.c.l.b16 %v1297
          %v1426 = vunpack.c.l.b16 %v1298
          %v1427 = vunpack.c.l.b16 %v1299
          %v1428 = vunpack.c.l.b16 %v1300
          %v1429 = vunpack.c.l.b16 %v1301
          %v1430 = vunpack.c.l.b16 %v1302
          %v1431 = vunpack.c.l.b16 %v1303
          %v1432 = vunpack.c.l.b16 %v1304
          %v1433 = vunpack.c.l.b16 %v1305
          %v1434 = vunpack.c.l.b16 %v1306
          %v1435 = vunpack.c.l.b16 %v1307
          %v1436 = vunpack.c.l.b16 %v1308
          %v1437 = vunpack.c.l.b16 %v1309
          %v1438 = vunpack.c.l.b16 %v1310
          %v1439 = vunpack.c.l.b16 %v1311
          %v1440 = vunpack.c.l.b16 %v1312
          %v1441 = vunpack.c.l.b16 %v1313
          %v1442 = vunpack.c.l.b16 %v1314
          %v1443 = vunpack.c.l.b16 %v1315
          %v1444 = vunpack.c.l.b16 %v1316
          %v1445 = vunpack.c.l.b16 %v1317
          %v1446 = vunpack.c.l.b16 %v1318
          %v1447 = vunpack.c.l.b16 %v1319
          %v1448 = vunpack.c.l.b16 %v1320
          %v1449 = vunpack.c.l.b16 %v1321
          %v1450 = vunpack.c.l.b16 %v1322
          %v1451 = vunpack.c.l.b16 %v1323
          %v1452 = vunpack.c.l.b16 %v1324
          %v1453 = vunpack.c.l.b16 %v1325
          %v1454 = vunpack.c.l.b16 %v1326
          %v1455 = vunpack.c.l.b16 %v1327
          %v1456 = vunpack.c.l.b16 %v1328
          %v1457 = vunpack.c.l.b16 %v1329
          %v1458 = vunpack.c.l.b16 %v1330
          %v1459 = vunpack.c.l.b16 %v1331
          %v1460 = vunpack.c.l.b16 %v1332
          %v1461 = vunpack.c.l.b16 %v1333
          %v1462 = vunpack.c.l.b16 %v1334
          %v1463 = vunpack.c.l.b16 %v1335
          %v1464 = vunpack.c.l.b16 %v1336
          %v1465 = vunpack.c.l.b16 %v1337
          %v1466 = vunpack.c.l.b16 %v1338
          %v1467 = vunpack.c.l.b16 %v1339
          %v1468 = vunpack.c.l.b16 %v1340
          %v1469 = vunpack.c.l.b16 %v1341
          %v1470 = vunpack.c.l.b16 %v1342
          %v1471 = vunpack.c.l.b16 %v1343
          %v1472 = vunpack.c.l.b16 %v1344
          %v1473 = vpack.c.b16 %v1410, %v1409
          %v1474 = vpack.c.b16 %v1412, %v1411
          %v1475 = vpack.c.b16 %v1414, %v1413
          %v1476 = vpack.c.b16 %v1416, %v1415
          %v1477 = vpack.c.b16 %v1418, %v1417
          %v1478 = vpack.c.b16 %v1420, %v1419
          %v1479 = vpack.c.b16 %v1422, %v1421
          %v1480 = vpack.c.b16 %v1424, %v1423
          %v1481 = vpack.c.b16 %v1426, %v1425
          %v1482 = vpack.c.b16 %v1428, %v1427
          %v1483 = vpack.c.b16 %v1430, %v1429
          %v1484 = vpack.c.b16 %v1432, %v1431
          %v1485 = vpack.c.b16 %v1434, %v1433
          %v1486 = vpack.c.b16 %v1436, %v1435
          %v1487 = vpack.c.b16 %v1438, %v1437
          %v1488 = vpack.c.b16 %v1440, %v1439
          %v1489 = vpack.c.b16 %v1442, %v1441
          %v1490 = vpack.c.b16 %v1444, %v1443
          %v1491 = vpack.c.b16 %v1446, %v1445
          %v1492 = vpack.c.b16 %v1448, %v1447
          %v1493 = vpack.c.b16 %v1450, %v1449
          %v1494 = vpack.c.b16 %v1452, %v1451
          %v1495 = vpack.c.b16 %v1454, %v1453
          %v1496 = vpack.c.b16 %v1456, %v1455
          %v1497 = vpack.c.b16 %v1458, %v1457
          %v1498 = vpack.c.b16 %v1460, %v1459
          %v1499 = vpack.c.b16 %v1462, %v1461
          %v1500 = vpack.c.b16 %v1464, %v1463
          %v1501 = vpack.c.b16 %v1466, %v1465
          %v1502 = vpack.c.b16 %v1468, %v1467
          %v1503 = vpack.c.b16 %v1470, %v1469
          %v1504 = vpack.c.b16 %v1472, %v1471
          %1537 = vmatprep.subr.bf16.mxu0 0
          %1538 = vmatpush1.bf16.xpose.msra.mxu0 %v1480
          %1539 = vmatprep.subr.bf16.mxu0 0
          %1540 = vmatpush1.bf16.xpose.msra.mxu0 %v1479
          %1541 = vmatprep.subr.bf16.mxu0 0
          %1542 = vmatpush1.bf16.xpose.msra.mxu0 %v1478
          %1543 = vmatprep.subr.bf16.mxu0 0
          %1544 = vmatpush1.bf16.xpose.msra.mxu0 %v1477
          %1545 = vmatprep.subr.bf16.mxu0 0
          %1546 = vmatpush1.bf16.xpose.msra.mxu0 %v1476
          %1547 = vmatprep.subr.bf16.mxu0 0
          %1548 = vmatpush1.bf16.xpose.msra.mxu0 %v1475
          %1549 = vmatprep.subr.bf16.mxu0 0
          %1550 = vmatpush1.bf16.xpose.msra.mxu0 %v1474
          %1551 = vmatprep.subr.bf16.mxu0 0
          %1552 = vmatpush1.bf16.xpose.msra.mxu0 %v1473
          %1553 = vmatprep.subr.bf16.mxu0 0
          %1554 = vmatpush2.bf16.xpose.msra.mxu0 %v1488
          %1555 = vmatprep.subr.bf16.mxu0 0
          %1556 = vmatpush2.bf16.xpose.msra.mxu0 %v1487
          %1557 = vmatprep.subr.bf16.mxu0 0
          %1558 = vmatpush2.bf16.xpose.msra.mxu0 %v1486
          %1559 = vmatprep.subr.bf16.mxu0 0
          %1560 = vmatpush2.bf16.xpose.msra.mxu0 %v1485
          %1561 = vmatprep.subr.bf16.mxu0 0
          %1562 = vmatpush2.bf16.xpose.msra.mxu0 %v1484
          %1563 = vmatprep.subr.bf16.mxu0 0
          %1564 = vmatpush2.bf16.xpose.msra.mxu0 %v1483
          %1565 = vmatprep.subr.bf16.mxu0 0
          %1566 = vmatpush2.bf16.xpose.msra.mxu0 %v1482
          %1567 = vmatprep.subr.bf16.mxu0 0
          %1568 = vmatpush2.bf16.xpose.msra.mxu0 %v1481
          %1569 = vmatprep.mubr.bf16.mxu0 0
          %1570 = vmatmul.mubr.bf16.gmra.mxu0 %v1280
          %v1571 = vpop.f32.mrf.mxu0
          %v1572 = vadd.f32 0.0, %v1571
          %v1573 = vpop.f32.mrf.mxu0
          %v1574 = vadd.f32 0.0, %v1573
          %v1575 = vpop.f32.mrf.mxu0
          %v1576 = vpop.f32.mrf.mxu0
          %1577 = vdwg.mxu0
          %1578 = vmatprep.subr.bf16.mxu0 0
          %1579 = vmatpush1.bf16.xpose.msra.mxu0 %v1496
          %1580 = vmatprep.subr.bf16.mxu0 0
          %1581 = vmatpush1.bf16.xpose.msra.mxu0 %v1495
          %1582 = vmatprep.subr.bf16.mxu0 0
          %1583 = vmatpush1.bf16.xpose.msra.mxu0 %v1494
          %1584 = vmatprep.subr.bf16.mxu0 0
          %1585 = vmatpush1.bf16.xpose.msra.mxu0 %v1493
          %1586 = vmatprep.subr.bf16.mxu0 0
          %1587 = vmatpush1.bf16.xpose.msra.mxu0 %v1492
          %1588 = vmatprep.subr.bf16.mxu0 0
          %1589 = vmatpush1.bf16.xpose.msra.mxu0 %v1491
          %1590 = vmatprep.subr.bf16.mxu0 0
          %1591 = vmatpush1.bf16.xpose.msra.mxu0 %v1490
          %1592 = vmatprep.subr.bf16.mxu0 0
          %1593 = vmatpush1.bf16.xpose.msra.mxu0 %v1489
          %1594 = vmatprep.subr.bf16.mxu0 0
          %1595 = vmatpush2.bf16.xpose.msra.mxu0 %v1504
          %1596 = vmatprep.subr.bf16.mxu0 0
          %1597 = vmatpush2.bf16.xpose.msra.mxu0 %v1503
          %1598 = vmatprep.subr.bf16.mxu0 0
          %1599 = vmatpush2.bf16.xpose.msra.mxu0 %v1502
          %1600 = vmatprep.subr.bf16.mxu0 0
          %1601 = vmatpush2.bf16.xpose.msra.mxu0 %v1501
          %1602 = vmatprep.subr.bf16.mxu0 0
          %1603 = vmatpush2.bf16.xpose.msra.mxu0 %v1500
          %1604 = vmatprep.subr.bf16.mxu0 0
          %1605 = vmatpush2.bf16.xpose.msra.mxu0 %v1499
          %1606 = vmatprep.subr.bf16.mxu0 0
          %1607 = vmatpush2.bf16.xpose.msra.mxu0 %v1498
          %1608 = vmatprep.subr.bf16.mxu0 0
          %1609 = vmatpush2.bf16.xpose.msra.mxu0 %v1497
          %1610 = vmatprep.mubr.bf16.mxu0 0
          %1611 = vmatmul.mubr.bf16.gmra.mxu0 %v1280
          %v1612 = vpop.f32.mrf.mxu0
          %v1613 = vadd.f32 0.0, %v1612
          %v1614 = vpop.f32.mrf.mxu0
          %v1615 = vadd.f32 0.0, %v1614
          %v1616 = vpop.f32.mrf.mxu0
          %v1617 = vpop.f32.mrf.mxu0
          %1618 = vdwg.mxu0
          %v1619 = vld [vmem:[%s302] sm:$0xff]
          %v1621 = vcombine.high %v1619, %v1619
          %v1623 = vunpack.c.l.s4 1983009808
          %v1624 = vunpack.c.0.s8 %v1623
          %v1625 = vlaneseq
          %v1626 = vshrl.u32 %v1625, 7
          %v1627 = vsub.s32 %v1624, %v1626
          %v1628 = vrot.slane %v1619, %v1627
          %v1630 = vunpack.c.l.s4 1983009808
          %v1631 = vunpack.c.0.s8 %v1630
          %v1632 = vlaneseq
          %v1633 = vshrl.u32 %v1632, 7
          %v1634 = vsub.s32 %v1631, %v1633
          %v1635 = vrot.slane %v1621, %v1634
          %v1636 = vcombine.high %v1628, %v1628
          %v1637 = vcombine.high %v1635, %v1635
          %v1642 = vsub.f32 %v1572, %v1628
          %v1643 = vsub.f32 %v1574, %v1636
          %v1644 = vsub.f32 %v1613, %v1635
          %v1645 = vsub.f32 %v1615, %v1637
          %v1646 = vmul.f32 %v1642, %v1642
          %v1647 = vmul.f32 %v1643, %v1643
          %v1648 = vmul.f32 %v1644, %v1644
          %v1649 = vmul.f32 %v1645, %v1645
          %v1650 = vld [vmem:[#allocation13] sm:$0x3]
          %v1651 = vadd.f32 %v1650, %v1646
          %1652 = vst [vmem:[#allocation13] sm:$0x3] %v1651
          %v1653 = vld [vmem:[#allocation13] sm:$0x3]
          %v1654 = vadd.f32 %v1653, %v1647
          %1655 = vst [vmem:[#allocation13] sm:$0x3] %v1654
          %v1656 = vld [vmem:[#allocation13] sm:$0x3]
          %v1657 = vadd.f32 %v1656, %v1648
          %1658 = vst [vmem:[#allocation13] sm:$0x3] %v1657
          %v1659 = vld [vmem:[#allocation13] sm:$0x3]
          %v1660 = vadd.f32 %v1659, %v1649
          %1661 = vst [vmem:[#allocation13] sm:$0x3] %v1660
          %v1662 = vld [vmem:[%s315 + $0x100] sm:$0xf]
          %v1663 = vld [vmem:[%s315 + $0x104] sm:$0xf]
          %v1664 = vld [vmem:[%s315 + $0x108] sm:$0xf]
          %v1665 = vld [vmem:[%s315 + $0x10c] sm:$0xf]
          %v1666 = vld [vmem:[%s315 + $0x110] sm:$0xf]
          %v1667 = vld [vmem:[%s315 + $0x114] sm:$0xf]
          %v1668 = vld [vmem:[%s315 + $0x118] sm:$0xf]
          %v1669 = vld [vmem:[%s315 + $0x11c] sm:$0xf]
          %v1670 = vld [vmem:[%s315 + $0x120] sm:$0xf]
          %v1671 = vld [vmem:[%s315 + $0x124] sm:$0xf]
          %v1672 = vld [vmem:[%s315 + $0x128] sm:$0xf]
          %v1673 = vld [vmem:[%s315 + $0x12c] sm:$0xf]
          %v1674 = vld [vmem:[%s315 + $0x130] sm:$0xf]
          %v1675 = vld [vmem:[%s315 + $0x134] sm:$0xf]
          %v1676 = vld [vmem:[%s315 + $0x138] sm:$0xf]
          %v1677 = vld [vmem:[%s315 + $0x13c] sm:$0xf]
          %v1678 = vld [vmem:[%s315 + $0x140] sm:$0xf]
          %v1679 = vld [vmem:[%s315 + $0x144] sm:$0xf]
          %v1680 = vld [vmem:[%s315 + $0x148] sm:$0xf]
          %v1681 = vld [vmem:[%s315 + $0x14c] sm:$0xf]
          %v1682 = vld [vmem:[%s315 + $0x150] sm:$0xf]
          %v1683 = vld [vmem:[%s315 + $0x154] sm:$0xf]
          %v1684 = vld [vmem:[%s315 + $0x158] sm:$0xf]
          %v1685 = vld [vmem:[%s315 + $0x15c] sm:$0xf]
          %v1686 = vld [vmem:[%s315 + $0x160] sm:$0xf]
          %v1687 = vld [vmem:[%s315 + $0x164] sm:$0xf]
          %v1688 = vld [vmem:[%s315 + $0x168] sm:$0xf]
          %v1689 = vld [vmem:[%s315 + $0x16c] sm:$0xf]
          %v1690 = vld [vmem:[%s315 + $0x170] sm:$0xf]
          %v1691 = vld [vmem:[%s315 + $0x174] sm:$0xf]
          %v1692 = vld [vmem:[%s315 + $0x178] sm:$0xf]
          %v1693 = vld [vmem:[%s315 + $0x17c] sm:$0xf]
          %v1694 = vld [vmem:[%s315 + $0x180] sm:$0xf]
          %v1695 = vld [vmem:[%s315 + $0x184] sm:$0xf]
          %v1696 = vld [vmem:[%s315 + $0x188] sm:$0xf]
          %v1697 = vld [vmem:[%s315 + $0x18c] sm:$0xf]
          %v1698 = vld [vmem:[%s315 + $0x190] sm:$0xf]
          %v1699 = vld [vmem:[%s315 + $0x194] sm:$0xf]
          %v1700 = vld [vmem:[%s315 + $0x198] sm:$0xf]
          %v1701 = vld [vmem:[%s315 + $0x19c] sm:$0xf]
          %v1702 = vld [vmem:[%s315 + $0x1a0] sm:$0xf]
          %v1703 = vld [vmem:[%s315 + $0x1a4] sm:$0xf]
          %v1704 = vld [vmem:[%s315 + $0x1a8] sm:$0xf]
          %v1705 = vld [vmem:[%s315 + $0x1ac] sm:$0xf]
          %v1706 = vld [vmem:[%s315 + $0x1b0] sm:$0xf]
          %v1707 = vld [vmem:[%s315 + $0x1b4] sm:$0xf]
          %v1708 = vld [vmem:[%s315 + $0x1b8] sm:$0xf]
          %v1709 = vld [vmem:[%s315 + $0x1bc] sm:$0xf]
          %v1710 = vld [vmem:[%s315 + $0x1c0] sm:$0xf]
          %v1711 = vld [vmem:[%s315 + $0x1c4] sm:$0xf]
          %v1712 = vld [vmem:[%s315 + $0x1c8] sm:$0xf]
          %v1713 = vld [vmem:[%s315 + $0x1cc] sm:$0xf]
          %v1714 = vld [vmem:[%s315 + $0x1d0] sm:$0xf]
          %v1715 = vld [vmem:[%s315 + $0x1d4] sm:$0xf]
          %v1716 = vld [vmem:[%s315 + $0x1d8] sm:$0xf]
          %v1717 = vld [vmem:[%s315 + $0x1dc] sm:$0xf]
          %v1718 = vld [vmem:[%s315 + $0x1e0] sm:$0xf]
          %v1719 = vld [vmem:[%s315 + $0x1e4] sm:$0xf]
          %v1720 = vld [vmem:[%s315 + $0x1e8] sm:$0xf]
          %v1721 = vld [vmem:[%s315 + $0x1ec] sm:$0xf]
          %v1722 = vld [vmem:[%s315 + $0x1f0] sm:$0xf]
          %v1723 = vld [vmem:[%s315 + $0x1f4] sm:$0xf]
          %v1724 = vld [vmem:[%s315 + $0x1f8] sm:$0xf]
          %v1725 = vld [vmem:[%s315 + $0x1fc] sm:$0xf]
          %v1790 = vunpack.c.l.b16 %v1662
          %v1791 = vunpack.c.l.b16 %v1663
          %v1792 = vunpack.c.l.b16 %v1664
          %v1793 = vunpack.c.l.b16 %v1665
          %v1794 = vunpack.c.l.b16 %v1666
          %v1795 = vunpack.c.l.b16 %v1667
          %v1796 = vunpack.c.l.b16 %v1668
          %v1797 = vunpack.c.l.b16 %v1669
          %v1798 = vunpack.c.l.b16 %v1670
          %v1799 = vunpack.c.l.b16 %v1671
          %v1800 = vunpack.c.l.b16 %v1672
          %v1801 = vunpack.c.l.b16 %v1673
          %v1802 = vunpack.c.l.b16 %v1674
          %v1803 = vunpack.c.l.b16 %v1675
          %v1804 = vunpack.c.l.b16 %v1676
          %v1805 = vunpack.c.l.b16 %v1677
          %v1806 = vunpack.c.l.b16 %v1678
          %v1807 = vunpack.c.l.b16 %v1679
          %v1808 = vunpack.c.l.b16 %v1680
          %v1809 = vunpack.c.l.b16 %v1681
          %v1810 = vunpack.c.l.b16 %v1682
          %v1811 = vunpack.c.l.b16 %v1683
          %v1812 = vunpack.c.l.b16 %v1684
          %v1813 = vunpack.c.l.b16 %v1685
          %v1814 = vunpack.c.l.b16 %v1686
          %v1815 = vunpack.c.l.b16 %v1687
          %v1816 = vunpack.c.l.b16 %v1688
          %v1817 = vunpack.c.l.b16 %v1689
          %v1818 = vunpack.c.l.b16 %v1690
          %v1819 = vunpack.c.l.b16 %v1691
          %v1820 = vunpack.c.l.b16 %v1692
          %v1821 = vunpack.c.l.b16 %v1693
          %v1822 = vunpack.c.l.b16 %v1694
          %v1823 = vunpack.c.l.b16 %v1695
          %v1824 = vunpack.c.l.b16 %v1696
          %v1825 = vunpack.c.l.b16 %v1697
          %v1826 = vunpack.c.l.b16 %v1698
          %v1827 = vunpack.c.l.b16 %v1699
          %v1828 = vunpack.c.l.b16 %v1700
          %v1829 = vunpack.c.l.b16 %v1701
          %v1830 = vunpack.c.l.b16 %v1702
          %v1831 = vunpack.c.l.b16 %v1703
          %v1832 = vunpack.c.l.b16 %v1704
          %v1833 = vunpack.c.l.b16 %v1705
          %v1834 = vunpack.c.l.b16 %v1706
          %v1835 = vunpack.c.l.b16 %v1707
          %v1836 = vunpack.c.l.b16 %v1708
          %v1837 = vunpack.c.l.b16 %v1709
          %v1838 = vunpack.c.l.b16 %v1710
          %v1839 = vunpack.c.l.b16 %v1711
          %v1840 = vunpack.c.l.b16 %v1712
          %v1841 = vunpack.c.l.b16 %v1713
          %v1842 = vunpack.c.l.b16 %v1714
          %v1843 = vunpack.c.l.b16 %v1715
          %v1844 = vunpack.c.l.b16 %v1716
          %v1845 = vunpack.c.l.b16 %v1717
          %v1846 = vunpack.c.l.b16 %v1718
          %v1847 = vunpack.c.l.b16 %v1719
          %v1848 = vunpack.c.l.b16 %v1720
          %v1849 = vunpack.c.l.b16 %v1721
          %v1850 = vunpack.c.l.b16 %v1722
          %v1851 = vunpack.c.l.b16 %v1723
          %v1852 = vunpack.c.l.b16 %v1724
          %v1853 = vunpack.c.l.b16 %v1725
          %v1854 = vpack.c.b16 %v1791, %v1790
          %v1855 = vpack.c.b16 %v1793, %v1792
          %v1856 = vpack.c.b16 %v1795, %v1794
          %v1857 = vpack.c.b16 %v1797, %v1796
          %v1858 = vpack.c.b16 %v1799, %v1798
          %v1859 = vpack.c.b16 %v1801, %v1800
          %v1860 = vpack.c.b16 %v1803, %v1802
          %v1861 = vpack.c.b16 %v1805, %v1804
          %v1862 = vpack.c.b16 %v1807, %v1806
          %v1863 = vpack.c.b16 %v1809, %v1808
          %v1864 = vpack.c.b16 %v1811, %v1810
          %v1865 = vpack.c.b16 %v1813, %v1812
          %v1866 = vpack.c.b16 %v1815, %v1814
          %v1867 = vpack.c.b16 %v1817, %v1816
          %v1868 = vpack.c.b16 %v1819, %v1818
          %v1869 = vpack.c.b16 %v1821, %v1820
          %v1870 = vpack.c.b16 %v1823, %v1822
          %v1871 = vpack.c.b16 %v1825, %v1824
          %v1872 = vpack.c.b16 %v1827, %v1826
          %v1873 = vpack.c.b16 %v1829, %v1828
          %v1874 = vpack.c.b16 %v1831, %v1830
          %v1875 = vpack.c.b16 %v1833, %v1832
          %v1876 = vpack.c.b16 %v1835, %v1834
          %v1877 = vpack.c.b16 %v1837, %v1836
          %v1878 = vpack.c.b16 %v1839, %v1838
          %v1879 = vpack.c.b16 %v1841, %v1840
          %v1880 = vpack.c.b16 %v1843, %v1842
          %v1881 = vpack.c.b16 %v1845, %v1844
          %v1882 = vpack.c.b16 %v1847, %v1846
          %v1883 = vpack.c.b16 %v1849, %v1848
          %v1884 = vpack.c.b16 %v1851, %v1850
          %v1885 = vpack.c.b16 %v1853, %v1852
          %1918 = vmatprep.subr.bf16.mxu0 0
          %1919 = vmatpush1.bf16.xpose.msra.mxu0 %v1861
          %1920 = vmatprep.subr.bf16.mxu0 0
          %1921 = vmatpush1.bf16.xpose.msra.mxu0 %v1860
          %1922 = vmatprep.subr.bf16.mxu0 0
          %1923 = vmatpush1.bf16.xpose.msra.mxu0 %v1859
          %1924 = vmatprep.subr.bf16.mxu0 0
          %1925 = vmatpush1.bf16.xpose.msra.mxu0 %v1858
          %1926 = vmatprep.subr.bf16.mxu0 0
          %1927 = vmatpush1.bf16.xpose.msra.mxu0 %v1857
          %1928 = vmatprep.subr.bf16.mxu0 0
          %1929 = vmatpush1.bf16.xpose.msra.mxu0 %v1856
          %1930 = vmatprep.subr.bf16.mxu0 0
          %1931 = vmatpush1.bf16.xpose.msra.mxu0 %v1855
          %1932 = vmatprep.subr.bf16.mxu0 0
          %1933 = vmatpush1.bf16.xpose.msra.mxu0 %v1854
          %1934 = vmatprep.subr.bf16.mxu0 0
          %1935 = vmatpush2.bf16.xpose.msra.mxu0 %v1869
          %1936 = vmatprep.subr.bf16.mxu0 0
          %1937 = vmatpush2.bf16.xpose.msra.mxu0 %v1868
          %1938 = vmatprep.subr.bf16.mxu0 0
          %1939 = vmatpush2.bf16.xpose.msra.mxu0 %v1867
          %1940 = vmatprep.subr.bf16.mxu0 0
          %1941 = vmatpush2.bf16.xpose.msra.mxu0 %v1866
          %1942 = vmatprep.subr.bf16.mxu0 0
          %1943 = vmatpush2.bf16.xpose.msra.mxu0 %v1865
          %1944 = vmatprep.subr.bf16.mxu0 0
          %1945 = vmatpush2.bf16.xpose.msra.mxu0 %v1864
          %1946 = vmatprep.subr.bf16.mxu0 0
          %1947 = vmatpush2.bf16.xpose.msra.mxu0 %v1863
          %1948 = vmatprep.subr.bf16.mxu0 0
          %1949 = vmatpush2.bf16.xpose.msra.mxu0 %v1862
          %1950 = vmatprep.mubr.bf16.mxu0 0
          %1951 = vmatmul.mubr.bf16.gmra.mxu0 %v1280
          %v1952 = vpop.f32.mrf.mxu0
          %v1953 = vadd.f32 0.0, %v1952
          %v1954 = vpop.f32.mrf.mxu0
          %v1955 = vadd.f32 0.0, %v1954
          %v1956 = vpop.f32.mrf.mxu0
          %v1957 = vpop.f32.mrf.mxu0
          %1958 = vdwg.mxu0
          %1959 = vmatprep.subr.bf16.mxu0 0
          %1960 = vmatpush1.bf16.xpose.msra.mxu0 %v1877
          %1961 = vmatprep.subr.bf16.mxu0 0
          %1962 = vmatpush1.bf16.xpose.msra.mxu0 %v1876
          %1963 = vmatprep.subr.bf16.mxu0 0
          %1964 = vmatpush1.bf16.xpose.msra.mxu0 %v1875
          %1965 = vmatprep.subr.bf16.mxu0 0
          %1966 = vmatpush1.bf16.xpose.msra.mxu0 %v1874
          %1967 = vmatprep.subr.bf16.mxu0 0
          %1968 = vmatpush1.bf16.xpose.msra.mxu0 %v1873
          %1969 = vmatprep.subr.bf16.mxu0 0
          %1970 = vmatpush1.bf16.xpose.msra.mxu0 %v1872
          %1971 = vmatprep.subr.bf16.mxu0 0
          %1972 = vmatpush1.bf16.xpose.msra.mxu0 %v1871
          %1973 = vmatprep.subr.bf16.mxu0 0
          %1974 = vmatpush1.bf16.xpose.msra.mxu0 %v1870
          %1975 = vmatprep.subr.bf16.mxu0 0
          %1976 = vmatpush2.bf16.xpose.msra.mxu0 %v1885
          %1977 = vmatprep.subr.bf16.mxu0 0
          %1978 = vmatpush2.bf16.xpose.msra.mxu0 %v1884
          %1979 = vmatprep.subr.bf16.mxu0 0
          %1980 = vmatpush2.bf16.xpose.msra.mxu0 %v1883
          %1981 = vmatprep.subr.bf16.mxu0 0
          %1982 = vmatpush2.bf16.xpose.msra.mxu0 %v1882
          %1983 = vmatprep.subr.bf16.mxu0 0
          %1984 = vmatpush2.bf16.xpose.msra.mxu0 %v1881
          %1985 = vmatprep.subr.bf16.mxu0 0
          %1986 = vmatpush2.bf16.xpose.msra.mxu0 %v1880
          %1987 = vmatprep.subr.bf16.mxu0 0
          %1988 = vmatpush2.bf16.xpose.msra.mxu0 %v1879
          %1989 = vmatprep.subr.bf16.mxu0 0
          %1990 = vmatpush2.bf16.xpose.msra.mxu0 %v1878
          %1991 = vmatprep.mubr.bf16.mxu0 0
          %1992 = vmatmul.mubr.bf16.gmra.mxu0 %v1280
          %v1993 = vpop.f32.mrf.mxu0
          %v1994 = vadd.f32 0.0, %v1993
          %v1995 = vpop.f32.mrf.mxu0
          %v1996 = vadd.f32 0.0, %v1995
          %v1997 = vpop.f32.mrf.mxu0
          %v1998 = vpop.f32.mrf.mxu0
          %1999 = vdwg.mxu0
          %v2000 = vld [vmem:[%s302 + $0x8] sm:$0xff]
          %v2002 = vcombine.high %v2000, %v2000
          %v2004 = vunpack.c.l.s4 1983009808
          %v2005 = vunpack.c.0.s8 %v2004
          %v2006 = vlaneseq
          %v2007 = vshrl.u32 %v2006, 7
          %v2008 = vsub.s32 %v2005, %v2007
          %v2009 = vrot.slane %v2000, %v2008
          %v2011 = vunpack.c.l.s4 1983009808
          %v2012 = vunpack.c.0.s8 %v2011
          %v2013 = vlaneseq
          %v2014 = vshrl.u32 %v2013, 7
          %v2015 = vsub.s32 %v2012, %v2014
          %v2016 = vrot.slane %v2002, %v2015
          %v2017 = vcombine.high %v2009, %v2009
          %v2018 = vcombine.high %v2016, %v2016
          %v2023 = vsub.f32 %v1953, %v2009
          %v2024 = vsub.f32 %v1955, %v2017
          %v2025 = vsub.f32 %v1994, %v2016
          %v2026 = vsub.f32 %v1996, %v2018
          %v2027 = vmul.f32 %v2023, %v2023
          %v2028 = vmul.f32 %v2024, %v2024
          %v2029 = vmul.f32 %v2025, %v2025
          %v2030 = vmul.f32 %v2026, %v2026
          %v2031 = vld [vmem:[#allocation13] sm:$0x3]
          %v2032 = vadd.f32 %v2031, %v2027
          %2033 = vst [vmem:[#allocation13] sm:$0x3] %v2032
          %v2034 = vld [vmem:[#allocation13] sm:$0x3]
          %v2035 = vadd.f32 %v2034, %v2028
          %2036 = vst [vmem:[#allocation13] sm:$0x3] %v2035
          %v2037 = vld [vmem:[#allocation13] sm:$0x3]
          %v2038 = vadd.f32 %v2037, %v2029
          %2039 = vst [vmem:[#allocation13] sm:$0x3] %v2038
          %v2040 = vld [vmem:[#allocation13] sm:$0x3]
          %v2041 = vadd.f32 %v2040, %v2030
          %2042 = vst [vmem:[#allocation13] sm:$0x3] %v2041
        $region76: #{tpu_custom_call.1} parent=39 // pred_fallthru
          _
        // Predicated region
        $region77: #{tpu_custom_call.1} parent=39 // pred_check
          %p2043 = pneg %p169
        $region78: #{tpu_custom_call.1} parent=39 // pred_check_branch
          %2045 = sbr.rel (%p2043) target = $region80
        $region79: #{tpu_custom_call.1} parent=39 // pred_region
          %s2047 = ssub.s32 32, 32
          %2048 = vsyncadd [#allocation5], %s2047
          %s2050 = sshll.u32 [#allocation12], 4
          %s2051 = int_to_ptr.vmem [resolvable:$true] %s2050
          %2053 = dma.vmem_to_hbm [thread:$0]  %s2051, 32, %s5, [#allocation5]
        $region80: #{tpu_custom_call.1} parent=39 // pred_fallthru
          _
        // Predicated region
        $region81: #{tpu_custom_call.1} parent=39 // pred_check
          %p2054 = pneg %p190
        $region82: #{tpu_custom_call.1} parent=39 // pred_check_branch
          %2056 = sbr.rel (%p2054) target = $region84
        $region83: #{tpu_custom_call.1} parent=39 // pred_region
          %s2058 = ssub.s32 32, 32
          %2059 = vsyncadd [#allocation14], %s2058
          %s2061 = sshll.u32 [#allocation13], 4
          %s2062 = int_to_ptr.vmem [resolvable:$true] %s2061
          %2064 = dma.vmem_to_hbm [thread:$0]  %s2062, 32, %s6, [#allocation14]
        $region84: #{tpu_custom_call.1} parent=39 // pred_fallthru
          _
        // Predicated region
        $region85: #{tpu_custom_call.1} parent=39 // pred_check
          %p2065 = pneg %p169
        $region86: #{tpu_custom_call.1} parent=39 // pred_check_branch
          %2067 = sbr.rel (%p2065) target = $region88
        $region87: #{tpu_custom_call.1} parent=39 // pred_region
          %2068 = dma.done [#allocation5], 32
        $region88: #{tpu_custom_call.1} parent=39 // pred_fallthru
          _
        // Predicated region
        $region89: #{tpu_custom_call.1} parent=39 // pred_check
          %p2069 = pneg %p190
        $region90: #{tpu_custom_call.1} parent=39 // pred_check_branch
          %2071 = sbr.rel (%p2069) target = $region92
        $region91: #{tpu_custom_call.1} parent=39 // pred_region
          %2072 = dma.done [#allocation14], 32
        $region92: #{tpu_custom_call.1} parent=39 // pred_fallthru
          _
      $region40: #{tpu_custom_call.1} parent=5 // pred_fallthru
        _
      %p2073 = scmp.le.s32.totalorder 2, %s20
      // Predicated region
      $region93: #{tpu_custom_call.1} parent=5 // pred_check
        %p2074 = pneg %p2073
      $region94: #{tpu_custom_call.1} parent=5 // pred_check_branch
        %2076 = sbr.rel (%p2074) target = $region96
      $region95: #{tpu_custom_call.1} parent=5 // pred_region
        %s2077 = ssub.s32 %s20, 2
      $region96: #{tpu_custom_call.1} parent=5 // pred_fallthru
        _
    $region6: #{tpu_custom_call.1} parent=1 // loop_footer
      %s24 = sadd.s32 1, %s20
    $region7: #{tpu_custom_call.1} parent=1 // loop_footer_branch
      %19 = sbr.rel target = $region3
    $region8: #{tpu_custom_call.1} parent=1 // loop_exit
      _
    %2078 = vsyncpa [#allocation4], 1
    %s2079 = scalar_lea.sflag [#allocation4], 1
    %2080 = vsyncpa %s2079, 1
    %2081 = vsyncpa [#allocation7], 1
    %2082 = vsyncpa [#allocation11], 1
    %2083 = vsyncpa [#allocation5], 1
    %s2084 = scalar_lea.sflag [#allocation5], 1
    %2085 = vsyncpa %s2084, 1
    %2086 = vsyncpa [#allocation14], 1

</llo_original>
